<compile_context>
chip_gen: v7x
topology: tpu7x:2x2x1
jax: 0.10.0
libtpu: 0.0.40
codegen_flags: <defaults>
</compile_context>

<pallas_src>
import functools

import jax
import jax.numpy as jnp
import numpy as np
from jax.experimental import pallas as pl
from jax.experimental.pallas import tpu as pltpu


# ----------------------------------------------------------------------------
# Fused decoder-layer kernel (one grid step == one batch element)
# ----------------------------------------------------------------------------
def _add_ln(x, y, g, b, eps):
    # residual add then LayerNorm over last dim (PyTorch semantics, biased var)
    z = x + y
    mu = jnp.mean(z, axis=-1, keepdims=True)
    zc = z - mu
    var = jnp.mean(zc * zc, axis=-1, keepdims=True)
    return zc * jax.lax.rsqrt(var + eps) * g + b


def _decoder_layer_kernel(tgt_ref, mem_ref, posd_ref, pose_ref,
                          wq_ref, bq_ref, wk_ref, bk_ref, wv_ref, bv_ref,
                          wo_ref, bo_ref, w1_ref, b1_ref, w2_ref, b2_ref,
                          g1_ref, be1_ref, g2_ref, be2_ref,
                          o_ref, *, nhead, eps):
    tgt = tgt_ref[0]                       # (L, E)
    mem = mem_ref[0]                       # (S, E)
    L, E = tgt.shape
    H = nhead
    Dh = E // H

    # --- fused positional adds + Q/K/V projections --------------------------
    # Weights are pre-transposed to (K, N) in the wrapper; wq/bq are pre-scaled
    # by 1/sqrt(Dh) so no per-tile multiply is needed here.
    q = jnp.dot(tgt + posd_ref[0], wq_ref[...],
                preferred_element_type=jnp.float32) + bq_ref[...]
    k = jnp.dot(mem + pose_ref[0], wk_ref[...],
                preferred_element_type=jnp.float32) + bk_ref[...]
    v = jnp.dot(mem, wv_ref[...],
                preferred_element_type=jnp.float32) + bv_ref[...]

    wo = wo_ref[...]                       # (E, E), pre-transposed

    # --- multi-head attention, out-projection accumulated head-by-head ------
    # Accumulating a_h @ Wo^T[h-slice] avoids any in-kernel (L,H,Dh) reshape /
    # transpose / lane concatenation.
    # TODO(synk): attn_mask / key_padding_mask paths not implemented (all
    #             masks are None in this forward configuration).
    tgt2 = jnp.zeros((L, E), jnp.float32)
    for h in range(H):
        lo = h * Dh
        qh = q[:, lo:lo + Dh]              # (L, Dh)
        kh = k[:, lo:lo + Dh]              # (S, Dh)
        vh = v[:, lo:lo + Dh]              # (S, Dh)
        # scores via dot_general contracting last dims (no transposed K copy)
        s = jax.lax.dot_general(qh, kh, (((1,), (1,)), ((), ())),
                                preferred_element_type=jnp.float32)   # (L, S)
        s = s - jnp.max(s, axis=-1, keepdims=True)
        p = jnp.exp(s)
        p = p * pl.reciprocal(jnp.sum(p, axis=-1, keepdims=True), approx=True)
        ah = jnp.dot(p, vh, preferred_element_type=jnp.float32)       # (L, Dh)
        tgt2 = tgt2 + jnp.dot(ah, wo[lo:lo + Dh, :],
                              preferred_element_type=jnp.float32)
    tgt2 = tgt2 + bo_ref[...]

    # --- residual + LayerNorm1 ----------------------------------------------
    x = _add_ln(tgt, tgt2, g1_ref[...], be1_ref[...], eps)

    # --- FFN: linear2(relu(linear1(x))) — hidden never leaves VMEM ----------
    hdn = jnp.maximum(
        jnp.dot(x, w1_ref[...], preferred_element_type=jnp.float32)
        + b1_ref[...], 0.0)
    tgt2 = jnp.dot(hdn, w2_ref[...], preferred_element_type=jnp.float32) \
        + b2_ref[...]

    # --- residual + LayerNorm2 ----------------------------------------------
    o_ref[0] = _add_ln(x, tgt2, g2_ref[...], be2_ref[...], eps)


# ----------------------------------------------------------------------------
# Wrapper: one fused pallas_call, grid over batch ("parallel" for megacore)
# ----------------------------------------------------------------------------
@functools.partial(jax.jit, static_argnames=("nhead",))
def decoder_forward(params, tgt, memory, pos_dec, pos_enc, nhead):
    L, B, E = tgt.shape
    S = memory.shape[0]
    H = nhead
    Dh = E // H
    scale = 1.0 / float(np.sqrt(Dh))

    # batch-major layout so each grid step gets a clean (L, E)/(S, E) slab
    tgt_b = jnp.transpose(tgt, (1, 0, 2))        # (B, L, E)
    mem_b = jnp.transpose(memory, (1, 0, 2))     # (B, S, E)
    posd_b = jnp.transpose(pos_dec, (1, 0, 2))   # (B, L, E)
    pose_b = jnp.transpose(pos_enc, (1, 0, 2))   # (B, S, E)

    # one-time wrapper-side weight prep: pre-transpose to (K, N), fold the
    # 1/sqrt(Dh) attention scale into Wq / bq.
    wqT = (params["wq"] * scale).T               # (E, E)
    bq = (params["bq"] * scale).reshape(1, E)
    wkT = params["wk"].T
    bk = params["bk"].reshape(1, E)
    wvT = params["wv"].T
    bv = params["bv"].reshape(1, E)
    woT = params["wo"].T
    bo = params["bo"].reshape(1, E)
    w1T = params["w1"].T                         # (E, FF)
    b1 = params["b1"].reshape(1, -1)
    w2T = params["w2"].T                         # (FF, E)
    b2 = params["b2"].reshape(1, E)
    g1 = params["ln1_g"].reshape(1, E)
    be1 = params["ln1_b"].reshape(1, E)
    g2 = params["ln2_g"].reshape(1, E)
    be2 = params["ln2_b"].reshape(1, E)
    FF = w1T.shape[1]

    def batched(shape):                          # per-batch activation block
        return pl.BlockSpec(shape, lambda b: (b, 0, 0))

    def fixed(shape):                            # VMEM-resident parameter block
        nd = len(shape)
        return pl.BlockSpec(shape, lambda b: (0,) * nd)

    kern = functools.partial(_decoder_layer_kernel, nhead=H, eps=1e-5)

    out_b = pl.pallas_call(
        kern,
        out_shape=jax.ShapeDtypeStruct((B, L, E), jnp.float32),
        grid=(B,),
        in_specs=[
            batched((1, L, E)),                  # tgt
            batched((1, S, E)),                  # memory
            batched((1, L, E)),                  # pos_dec
            batched((1, S, E)),                  # pos_enc
            fixed((E, E)), fixed((1, E)),        # wqT, bq
            fixed((E, E)), fixed((1, E)),        # wkT, bk
            fixed((E, E)), fixed((1, E)),        # wvT, bv
            fixed((E, E)), fixed((1, E)),        # woT, bo
            fixed((E, FF)), fixed((1, FF)),      # w1T, b1
            fixed((FF, E)), fixed((1, E)),       # w2T, b2
            fixed((1, E)), fixed((1, E)),        # ln1_g, ln1_b
            fixed((1, E)), fixed((1, E)),        # ln2_g, ln2_b
        ],
        out_specs=batched((1, L, E)),
        compiler_params=pltpu.CompilerParams(
            dimension_semantics=("parallel",)),
    )(tgt_b, mem_b, posd_b, pose_b,
      wqT, bq, wkT, bk, wvT, bv, woT, bo,
      w1T, b1, w2T, b2, g1, be1, g2, be2)

    return jnp.transpose(out_b, (1, 0, 2))       # back to (L, B, E)


# ----------------------------------------------------------------------------
# Pure-JAX reference (same math) for a correctness check
# ----------------------------------------------------------------------------
def decoder_reference(params, tgt, memory, pos_dec, pos_enc, nhead):
    L, B, E = tgt.shape
    S = memory.shape[0]
    H = nhead
    Dh = E // H
    hi = jax.lax.Precision.HIGHEST

    def lin(x, w, b):
        return jnp.dot(x, w.T, precision=hi) + b

    def ln(z, g, b, eps=1e-5):
        mu = jnp.mean(z, -1, keepdims=True)
        var = jnp.mean((z - mu) ** 2, -1, keepdims=True)
        return (z - mu) * jax.lax.rsqrt(var + eps) * g + b

    q = lin((tgt + pos_dec).reshape(L * B, E), params["wq"], params["bq"])
    k = lin((memory + pos_enc).reshape(S * B, E), params["wk"], params["bk"])
    v = lin(memory.reshape(S * B, E), params["wv"], params["bv"])
    q = q.reshape(L, B * H, Dh).transpose(1, 0, 2) / np.sqrt(Dh)
    k = k.reshape(S, B * H, Dh).transpose(1, 0, 2)
    v = v.reshape(S, B * H, Dh).transpose(1, 0, 2)
    s = jnp.einsum("bld,bsd->bls", q, k, precision=hi)
    p = jax.nn.softmax(s, axis=-1)
    a = jnp.einsum("bls,bsd->bld", p, v, precision=hi)
    a = a.transpose(1, 0, 2).reshape(L * B, E)
    tgt2 = lin(a, params["wo"], params["bo"])
    x = ln(tgt.reshape(L * B, E) + tgt2, params["ln1_g"], params["ln1_b"])
    h = jnp.maximum(lin(x, params["w1"], params["b1"]), 0.0)
    tgt2 = lin(h, params["w2"], params["b2"])
    x = ln(x + tgt2, params["ln2_g"], params["ln2_b"])
    return x.reshape(L, B, E)


# ----------------------------------------------------------------------------
def init_params(key, d_model, nhead, dim_ff):
    ks = jax.random.split(key, 8)
    s = 0.02
    return {
        "wq": jax.random.normal(ks[0], (d_model, d_model), jnp.float32) * s,
        "wk": jax.random.normal(ks[1], (d_model, d_model), jnp.float32) * s,
        "wv": jax.random.normal(ks[2], (d_model, d_model), jnp.float32) * s,
        "wo": jax.random.normal(ks[3], (d_model, d_model), jnp.float32) * s,
        "bq": jnp.zeros((d_model,), jnp.float32),
        "bk": jnp.zeros((d_model,), jnp.float32),
        "bv": jnp.zeros((d_model,), jnp.float32),
        "bo": jnp.zeros((d_model,), jnp.float32),
        "w1": jax.random.normal(ks[4], (dim_ff, d_model), jnp.float32) * s,
        "b1": jnp.zeros((dim_ff,), jnp.float32),
        "w2": jax.random.normal(ks[5], (d_model, dim_ff), jnp.float32) * s,
        "b2": jnp.zeros((d_model,), jnp.float32),
        "ln1_g": jnp.ones((d_model,), jnp.float32),
        "ln1_b": jnp.zeros((d_model,), jnp.float32),
        "ln2_g": jnp.ones((d_model,), jnp.float32),
        "ln2_b": jnp.zeros((d_model,), jnp.float32),
    }


if __name__ == "__main__":
    L, S, B, E, H, FF = 8, 16, 2, 32, 4, 64

    key = jax.random.PRNGKey(0)
    k_tgt, k_mem, k_pd, k_pe, k_par = jax.random.split(key, 5)

    tgt = jax.random.normal(k_tgt, (L, B, E), jnp.float32)
    memory = jax.random.normal(k_mem, (S, B, E), jnp.float32)
    pos_dec = jax.random.normal(k_pd, (L, B, E), jnp.float32)
    pos_enc = jax.random.normal(k_pe, (S, B, E), jnp.float32)

    params = init_params(k_par, E, H, FF)

    out = decoder_forward(params, tgt, memory, pos_dec, pos_enc, nhead=H)
    out = jax.block_until_ready(out)

    ref = decoder_reference(params, tgt, memory, pos_dec, pos_enc, nhead=H)
    np.testing.assert_allclose(np.asarray(out), np.asarray(ref),
                               rtol=5e-3, atol=5e-3)
    assert out.shape == (L, B, E) and np.isfinite(np.asarray(out)).all()

    print("KERNEL_OK")
</pallas_src>

<mosaic_0001>
module attributes {stable_mosaic.version = 11 : i64} {
  func.func @_decoder_layer_kernel(%arg0: i32, %arg1: memref<1x8x32xf32, #tpu.memory_space<vmem>>, %arg2: memref<1x16x32xf32, #tpu.memory_space<vmem>>, %arg3: memref<1x8x32xf32, #tpu.memory_space<vmem>>, %arg4: memref<1x16x32xf32, #tpu.memory_space<vmem>>, %arg5: memref<32x32xf32, #tpu.memory_space<vmem>>, %arg6: memref<1x32xf32, #tpu.memory_space<vmem>>, %arg7: memref<32x32xf32, #tpu.memory_space<vmem>>, %arg8: memref<1x32xf32, #tpu.memory_space<vmem>>, %arg9: memref<32x32xf32, #tpu.memory_space<vmem>>, %arg10: memref<1x32xf32, #tpu.memory_space<vmem>>, %arg11: memref<32x32xf32, #tpu.memory_space<vmem>>, %arg12: memref<1x32xf32, #tpu.memory_space<vmem>>, %arg13: memref<32x64xf32, #tpu.memory_space<vmem>>, %arg14: memref<1x64xf32, #tpu.memory_space<vmem>>, %arg15: memref<64x32xf32, #tpu.memory_space<vmem>>, %arg16: memref<1x32xf32, #tpu.memory_space<vmem>>, %arg17: memref<1x32xf32, #tpu.memory_space<vmem>>, %arg18: memref<1x32xf32, #tpu.memory_space<vmem>>, %arg19: memref<1x32xf32, #tpu.memory_space<vmem>>, %arg20: memref<1x32xf32, #tpu.memory_space<vmem>>, %arg21: memref<1x8x32xf32, #tpu.memory_space<vmem>>) attributes {dimension_semantics = [#tpu.dimension_semantics<parallel>], iteration_bounds = array<i64: 2>, scalar_prefetch = 0 : i64, scratch_operands = 0 : i64, tpu.core_type = #tpu.core_type<tc>, window_params = [{transform_indices = @transform_0, window_bounds = array<i64: 1, 8, 32>}, {transform_indices = @transform_1, window_bounds = array<i64: 1, 16, 32>}, {transform_indices = @transform_2, window_bounds = array<i64: 1, 8, 32>}, {transform_indices = @transform_3, window_bounds = array<i64: 1, 16, 32>}, {pipeline_mode = #tpu.pipeline_mode<synchronous>, transform_indices = @transform_4, window_bounds = array<i64: 32, 32>}, {pipeline_mode = #tpu.pipeline_mode<synchronous>, transform_indices = @transform_5, window_bounds = array<i64: 1, 32>}, {pipeline_mode = #tpu.pipeline_mode<synchronous>, transform_indices = @transform_6, window_bounds = array<i64: 32, 32>}, {pipeline_mode = #tpu.pipeline_mode<synchronous>, transform_indices = @transform_7, window_bounds = array<i64: 1, 32>}, {pipeline_mode = #tpu.pipeline_mode<synchronous>, transform_indices = @transform_8, window_bounds = array<i64: 32, 32>}, {pipeline_mode = #tpu.pipeline_mode<synchronous>, transform_indices = @transform_9, window_bounds = array<i64: 1, 32>}, {pipeline_mode = #tpu.pipeline_mode<synchronous>, transform_indices = @transform_10, window_bounds = array<i64: 32, 32>}, {pipeline_mode = #tpu.pipeline_mode<synchronous>, transform_indices = @transform_11, window_bounds = array<i64: 1, 32>}, {pipeline_mode = #tpu.pipeline_mode<synchronous>, transform_indices = @transform_12, window_bounds = array<i64: 32, 64>}, {pipeline_mode = #tpu.pipeline_mode<synchronous>, transform_indices = @transform_13, window_bounds = array<i64: 1, 64>}, {pipeline_mode = #tpu.pipeline_mode<synchronous>, transform_indices = @transform_14, window_bounds = array<i64: 64, 32>}, {pipeline_mode = #tpu.pipeline_mode<synchronous>, transform_indices = @transform_15, window_bounds = array<i64: 1, 32>}, {pipeline_mode = #tpu.pipeline_mode<synchronous>, transform_indices = @transform_16, window_bounds = array<i64: 1, 32>}, {pipeline_mode = #tpu.pipeline_mode<synchronous>, transform_indices = @transform_17, window_bounds = array<i64: 1, 32>}, {pipeline_mode = #tpu.pipeline_mode<synchronous>, transform_indices = @transform_18, window_bounds = array<i64: 1, 32>}, {pipeline_mode = #tpu.pipeline_mode<synchronous>, transform_indices = @transform_19, window_bounds = array<i64: 1, 32>}, {transform_indices = @transform_20, window_bounds = array<i64: 1, 8, 32>}]} {
    %c0 = arith.constant 0 : index
    %c0_0 = arith.constant 0 : index
    %c0_1 = arith.constant 0 : index
    %0 = vector.load %arg1[%c0, %c0_0, %c0_1] : memref<1x8x32xf32, #tpu.memory_space<vmem>>, vector<1x8x32xf32>
    %1 = vector.shape_cast %0 : vector<1x8x32xf32> to vector<8x32xf32>
    %c0_2 = arith.constant 0 : index
    %c0_3 = arith.constant 0 : index
    %c0_4 = arith.constant 0 : index
    %2 = vector.load %arg2[%c0_2, %c0_3, %c0_4] : memref<1x16x32xf32, #tpu.memory_space<vmem>>, vector<1x16x32xf32>
    %3 = vector.shape_cast %2 : vector<1x16x32xf32> to vector<16x32xf32>
    %c0_5 = arith.constant 0 : index
    %c0_6 = arith.constant 0 : index
    %c0_7 = arith.constant 0 : index
    %4 = vector.load %arg3[%c0_5, %c0_6, %c0_7] : memref<1x8x32xf32, #tpu.memory_space<vmem>>, vector<1x8x32xf32>
    %5 = vector.shape_cast %4 : vector<1x8x32xf32> to vector<8x32xf32>
    %6 = arith.addf %1, %5 : vector<8x32xf32>
    %c0_8 = arith.constant 0 : index
    %c0_9 = arith.constant 0 : index
    %7 = vector.load %arg5[%c0_8, %c0_9] : memref<32x32xf32, #tpu.memory_space<vmem>>, vector<32x32xf32>
    %cst = arith.constant dense<0.000000e+00> : vector<8x32xf32>
    %8 = tpu.matmul %6, %7, %cst {dimension_numbers = #tpu.dot_dimension_numbers<[1], [0], [0], [1], [0, 0, 1, 1], [], []>} : vector<8x32xf32>, vector<32x32xf32>, vector<8x32xf32> -> vector<8x32xf32>
    %c0_10 = arith.constant 0 : index
    %c0_11 = arith.constant 0 : index
    %9 = vector.load %arg6[%c0_10, %c0_11] : memref<1x32xf32, #tpu.memory_space<vmem>>, vector<1x32xf32>
    %10 = vector.broadcast %9 : vector<1x32xf32> to vector<8x32xf32>
    %11 = arith.addf %8, %10 : vector<8x32xf32>
    %c0_12 = arith.constant 0 : index
    %c0_13 = arith.constant 0 : index
    %c0_14 = arith.constant 0 : index
    %12 = vector.load %arg4[%c0_12, %c0_13, %c0_14] : memref<1x16x32xf32, #tpu.memory_space<vmem>>, vector<1x16x32xf32>
    %13 = vector.shape_cast %12 : vector<1x16x32xf32> to vector<16x32xf32>
    %14 = arith.addf %3, %13 : vector<16x32xf32>
    %c0_15 = arith.constant 0 : index
    %c0_16 = arith.constant 0 : index
    %15 = vector.load %arg7[%c0_15, %c0_16] : memref<32x32xf32, #tpu.memory_space<vmem>>, vector<32x32xf32>
    %cst_17 = arith.constant dense<0.000000e+00> : vector<16x32xf32>
    %16 = tpu.matmul %14, %15, %cst_17 {dimension_numbers = #tpu.dot_dimension_numbers<[1], [0], [0], [1], [0, 0, 1, 1], [], []>} : vector<16x32xf32>, vector<32x32xf32>, vector<16x32xf32> -> vector<16x32xf32>
    %c0_18 = arith.constant 0 : index
    %c0_19 = arith.constant 0 : index
    %17 = vector.load %arg8[%c0_18, %c0_19] : memref<1x32xf32, #tpu.memory_space<vmem>>, vector<1x32xf32>
    %18 = vector.broadcast %17 : vector<1x32xf32> to vector<16x32xf32>
    %19 = arith.addf %16, %18 : vector<16x32xf32>
    %c0_20 = arith.constant 0 : index
    %c0_21 = arith.constant 0 : index
    %20 = vector.load %arg9[%c0_20, %c0_21] : memref<32x32xf32, #tpu.memory_space<vmem>>, vector<32x32xf32>
    %cst_22 = arith.constant dense<0.000000e+00> : vector<16x32xf32>
    %21 = tpu.matmul %3, %20, %cst_22 {dimension_numbers = #tpu.dot_dimension_numbers<[1], [0], [0], [1], [0, 0, 1, 1], [], []>} : vector<16x32xf32>, vector<32x32xf32>, vector<16x32xf32> -> vector<16x32xf32>
    %c0_23 = arith.constant 0 : index
    %c0_24 = arith.constant 0 : index
    %22 = vector.load %arg10[%c0_23, %c0_24] : memref<1x32xf32, #tpu.memory_space<vmem>>, vector<1x32xf32>
    %23 = vector.broadcast %22 : vector<1x32xf32> to vector<16x32xf32>
    %24 = arith.addf %21, %23 : vector<16x32xf32>
    %c0_25 = arith.constant 0 : index
    %c0_26 = arith.constant 0 : index
    %25 = vector.load %arg11[%c0_25, %c0_26] : memref<32x32xf32, #tpu.memory_space<vmem>>, vector<32x32xf32>
    %cst_27 = arith.constant 0.000000e+00 : f32
    %26 = vector.broadcast %cst_27 : f32 to vector<8x32xf32>
    %27 = vector.extract_strided_slice %11 {offsets = [0, 0], sizes = [8, 8], strides = [1, 1]} : vector<8x32xf32> to vector<8x8xf32>
    %28 = vector.extract_strided_slice %19 {offsets = [0, 0], sizes = [16, 8], strides = [1, 1]} : vector<16x32xf32> to vector<16x8xf32>
    %29 = vector.extract_strided_slice %24 {offsets = [0, 0], sizes = [16, 8], strides = [1, 1]} : vector<16x32xf32> to vector<16x8xf32>
    %cst_28 = arith.constant dense<0.000000e+00> : vector<8x16xf32>
    %30 = tpu.matmul %27, %28, %cst_28 {dimension_numbers = #tpu.dot_dimension_numbers<[1], [1], [0], [0], [0, 0, 1, 0], [], []>} : vector<8x8xf32>, vector<16x8xf32>, vector<8x16xf32> -> vector<8x16xf32>
    %cst_29 = arith.constant dense<0xFF800000> : vector<8xf32>
    %31 = vector.multi_reduction <maximumf>, %30, %cst_29 [1] : vector<8x16xf32> to vector<8xf32>
    %32 = vector.shape_cast %31 : vector<8xf32> to vector<8x1xf32>
    %33 = vector.broadcast %32 : vector<8x1xf32> to vector<8x16xf32>
    %34 = arith.subf %30, %33 : vector<8x16xf32>
    %35 = math.exp %34 : vector<8x16xf32>
    %cst_30 = arith.constant dense<0.000000e+00> : vector<8xf32>
    %36 = vector.multi_reduction <add>, %35, %cst_30 [1] : vector<8x16xf32> to vector<8xf32>
    %37 = vector.shape_cast %36 : vector<8xf32> to vector<8x1xf32>
    %38 = tpu.reciprocal %37 {approx = true} : vector<8x1xf32> -> vector<8x1xf32>
    %39 = vector.broadcast %38 : vector<8x1xf32> to vector<8x16xf32>
    %40 = arith.mulf %35, %39 : vector<8x16xf32>
    %cst_31 = arith.constant dense<0.000000e+00> : vector<8x8xf32>
    %41 = tpu.matmul %40, %29, %cst_31 {dimension_numbers = #tpu.dot_dimension_numbers<[1], [0], [0], [1], [0, 0, 1, 1], [], []>} : vector<8x16xf32>, vector<16x8xf32>, vector<8x8xf32> -> vector<8x8xf32>
    %42 = vector.extract_strided_slice %25 {offsets = [0, 0], sizes = [8, 32], strides = [1, 1]} : vector<32x32xf32> to vector<8x32xf32>
    %cst_32 = arith.constant dense<0.000000e+00> : vector<8x32xf32>
    %43 = tpu.matmul %41, %42, %cst_32 {dimension_numbers = #tpu.dot_dimension_numbers<[1], [0], [0], [1], [0, 0, 1, 1], [], []>} : vector<8x8xf32>, vector<8x32xf32>, vector<8x32xf32> -> vector<8x32xf32>
    %44 = arith.addf %26, %43 : vector<8x32xf32>
    %45 = vector.extract_strided_slice %11 {offsets = [0, 8], sizes = [8, 8], strides = [1, 1]} : vector<8x32xf32> to vector<8x8xf32>
    %46 = vector.extract_strided_slice %19 {offsets = [0, 8], sizes = [16, 8], strides = [1, 1]} : vector<16x32xf32> to vector<16x8xf32>
    %47 = vector.extract_strided_slice %24 {offsets = [0, 8], sizes = [16, 8], strides = [1, 1]} : vector<16x32xf32> to vector<16x8xf32>
    %cst_33 = arith.constant dense<0.000000e+00> : vector<8x16xf32>
    %48 = tpu.matmul %45, %46, %cst_33 {dimension_numbers = #tpu.dot_dimension_numbers<[1], [1], [0], [0], [0, 0, 1, 0], [], []>} : vector<8x8xf32>, vector<16x8xf32>, vector<8x16xf32> -> vector<8x16xf32>
    %cst_34 = arith.constant dense<0xFF800000> : vector<8xf32>
    %49 = vector.multi_reduction <maximumf>, %48, %cst_34 [1] : vector<8x16xf32> to vector<8xf32>
    %50 = vector.shape_cast %49 : vector<8xf32> to vector<8x1xf32>
    %51 = vector.broadcast %50 : vector<8x1xf32> to vector<8x16xf32>
    %52 = arith.subf %48, %51 : vector<8x16xf32>
    %53 = math.exp %52 : vector<8x16xf32>
    %cst_35 = arith.constant dense<0.000000e+00> : vector<8xf32>
    %54 = vector.multi_reduction <add>, %53, %cst_35 [1] : vector<8x16xf32> to vector<8xf32>
    %55 = vector.shape_cast %54 : vector<8xf32> to vector<8x1xf32>
    %56 = tpu.reciprocal %55 {approx = true} : vector<8x1xf32> -> vector<8x1xf32>
    %57 = vector.broadcast %56 : vector<8x1xf32> to vector<8x16xf32>
    %58 = arith.mulf %53, %57 : vector<8x16xf32>
    %cst_36 = arith.constant dense<0.000000e+00> : vector<8x8xf32>
    %59 = tpu.matmul %58, %47, %cst_36 {dimension_numbers = #tpu.dot_dimension_numbers<[1], [0], [0], [1], [0, 0, 1, 1], [], []>} : vector<8x16xf32>, vector<16x8xf32>, vector<8x8xf32> -> vector<8x8xf32>
    %60 = vector.extract_strided_slice %25 {offsets = [8, 0], sizes = [8, 32], strides = [1, 1]} : vector<32x32xf32> to vector<8x32xf32>
    %cst_37 = arith.constant dense<0.000000e+00> : vector<8x32xf32>
    %61 = tpu.matmul %59, %60, %cst_37 {dimension_numbers = #tpu.dot_dimension_numbers<[1], [0], [0], [1], [0, 0, 1, 1], [], []>} : vector<8x8xf32>, vector<8x32xf32>, vector<8x32xf32> -> vector<8x32xf32>
    %62 = arith.addf %44, %61 : vector<8x32xf32>
    %63 = vector.extract_strided_slice %11 {offsets = [0, 16], sizes = [8, 8], strides = [1, 1]} : vector<8x32xf32> to vector<8x8xf32>
    %64 = vector.extract_strided_slice %19 {offsets = [0, 16], sizes = [16, 8], strides = [1, 1]} : vector<16x32xf32> to vector<16x8xf32>
    %65 = vector.extract_strided_slice %24 {offsets = [0, 16], sizes = [16, 8], strides = [1, 1]} : vector<16x32xf32> to vector<16x8xf32>
    %cst_38 = arith.constant dense<0.000000e+00> : vector<8x16xf32>
    %66 = tpu.matmul %63, %64, %cst_38 {dimension_numbers = #tpu.dot_dimension_numbers<[1], [1], [0], [0], [0, 0, 1, 0], [], []>} : vector<8x8xf32>, vector<16x8xf32>, vector<8x16xf32> -> vector<8x16xf32>
    %cst_39 = arith.constant dense<0xFF800000> : vector<8xf32>
    %67 = vector.multi_reduction <maximumf>, %66, %cst_39 [1] : vector<8x16xf32> to vector<8xf32>
    %68 = vector.shape_cast %67 : vector<8xf32> to vector<8x1xf32>
    %69 = vector.broadcast %68 : vector<8x1xf32> to vector<8x16xf32>
    %70 = arith.subf %66, %69 : vector<8x16xf32>
    %71 = math.exp %70 : vector<8x16xf32>
    %cst_40 = arith.constant dense<0.000000e+00> : vector<8xf32>
    %72 = vector.multi_reduction <add>, %71, %cst_40 [1] : vector<8x16xf32> to vector<8xf32>
    %73 = vector.shape_cast %72 : vector<8xf32> to vector<8x1xf32>
    %74 = tpu.reciprocal %73 {approx = true} : vector<8x1xf32> -> vector<8x1xf32>
    %75 = vector.broadcast %74 : vector<8x1xf32> to vector<8x16xf32>
    %76 = arith.mulf %71, %75 : vector<8x16xf32>
    %cst_41 = arith.constant dense<0.000000e+00> : vector<8x8xf32>
    %77 = tpu.matmul %76, %65, %cst_41 {dimension_numbers = #tpu.dot_dimension_numbers<[1], [0], [0], [1], [0, 0, 1, 1], [], []>} : vector<8x16xf32>, vector<16x8xf32>, vector<8x8xf32> -> vector<8x8xf32>
    %78 = vector.extract_strided_slice %25 {offsets = [16, 0], sizes = [8, 32], strides = [1, 1]} : vector<32x32xf32> to vector<8x32xf32>
    %cst_42 = arith.constant dense<0.000000e+00> : vector<8x32xf32>
    %79 = tpu.matmul %77, %78, %cst_42 {dimension_numbers = #tpu.dot_dimension_numbers<[1], [0], [0], [1], [0, 0, 1, 1], [], []>} : vector<8x8xf32>, vector<8x32xf32>, vector<8x32xf32> -> vector<8x32xf32>
    %80 = arith.addf %62, %79 : vector<8x32xf32>
    %81 = vector.extract_strided_slice %11 {offsets = [0, 24], sizes = [8, 8], strides = [1, 1]} : vector<8x32xf32> to vector<8x8xf32>
    %82 = vector.extract_strided_slice %19 {offsets = [0, 24], sizes = [16, 8], strides = [1, 1]} : vector<16x32xf32> to vector<16x8xf32>
    %83 = vector.extract_strided_slice %24 {offsets = [0, 24], sizes = [16, 8], strides = [1, 1]} : vector<16x32xf32> to vector<16x8xf32>
    %cst_43 = arith.constant dense<0.000000e+00> : vector<8x16xf32>
    %84 = tpu.matmul %81, %82, %cst_43 {dimension_numbers = #tpu.dot_dimension_numbers<[1], [1], [0], [0], [0, 0, 1, 0], [], []>} : vector<8x8xf32>, vector<16x8xf32>, vector<8x16xf32> -> vector<8x16xf32>
    %cst_44 = arith.constant dense<0xFF800000> : vector<8xf32>
    %85 = vector.multi_reduction <maximumf>, %84, %cst_44 [1] : vector<8x16xf32> to vector<8xf32>
    %86 = vector.shape_cast %85 : vector<8xf32> to vector<8x1xf32>
    %87 = vector.broadcast %86 : vector<8x1xf32> to vector<8x16xf32>
    %88 = arith.subf %84, %87 : vector<8x16xf32>
    %89 = math.exp %88 : vector<8x16xf32>
    %cst_45 = arith.constant dense<0.000000e+00> : vector<8xf32>
    %90 = vector.multi_reduction <add>, %89, %cst_45 [1] : vector<8x16xf32> to vector<8xf32>
    %91 = vector.shape_cast %90 : vector<8xf32> to vector<8x1xf32>
    %92 = tpu.reciprocal %91 {approx = true} : vector<8x1xf32> -> vector<8x1xf32>
    %93 = vector.broadcast %92 : vector<8x1xf32> to vector<8x16xf32>
    %94 = arith.mulf %89, %93 : vector<8x16xf32>
    %cst_46 = arith.constant dense<0.000000e+00> : vector<8x8xf32>
    %95 = tpu.matmul %94, %83, %cst_46 {dimension_numbers = #tpu.dot_dimension_numbers<[1], [0], [0], [1], [0, 0, 1, 1], [], []>} : vector<8x16xf32>, vector<16x8xf32>, vector<8x8xf32> -> vector<8x8xf32>
    %96 = vector.extract_strided_slice %25 {offsets = [24, 0], sizes = [8, 32], strides = [1, 1]} : vector<32x32xf32> to vector<8x32xf32>
    %cst_47 = arith.constant dense<0.000000e+00> : vector<8x32xf32>
    %97 = tpu.matmul %95, %96, %cst_47 {dimension_numbers = #tpu.dot_dimension_numbers<[1], [0], [0], [1], [0, 0, 1, 1], [], []>} : vector<8x8xf32>, vector<8x32xf32>, vector<8x32xf32> -> vector<8x32xf32>
    %98 = arith.addf %80, %97 : vector<8x32xf32>
    %c0_48 = arith.constant 0 : index
    %c0_49 = arith.constant 0 : index
    %99 = vector.load %arg12[%c0_48, %c0_49] : memref<1x32xf32, #tpu.memory_space<vmem>>, vector<1x32xf32>
    %100 = vector.broadcast %99 : vector<1x32xf32> to vector<8x32xf32>
    %101 = arith.addf %98, %100 : vector<8x32xf32>
    %c0_50 = arith.constant 0 : index
    %c0_51 = arith.constant 0 : index
    %102 = vector.load %arg17[%c0_50, %c0_51] : memref<1x32xf32, #tpu.memory_space<vmem>>, vector<1x32xf32>
    %c0_52 = arith.constant 0 : index
    %c0_53 = arith.constant 0 : index
    %103 = vector.load %arg18[%c0_52, %c0_53] : memref<1x32xf32, #tpu.memory_space<vmem>>, vector<1x32xf32>
    %104 = arith.addf %1, %101 : vector<8x32xf32>
    %cst_54 = arith.constant dense<0.000000e+00> : vector<8xf32>
    %105 = vector.multi_reduction <add>, %104, %cst_54 [1] : vector<8x32xf32> to vector<8xf32>
    %106 = vector.shape_cast %105 : vector<8xf32> to vector<8x1xf32>
    %cst_55 = arith.constant 3.200000e+01 : f32
    %107 = vector.broadcast %cst_55 : f32 to vector<8x1xf32>
    %108 = arith.divf %106, %107 : vector<8x1xf32>
    %109 = vector.broadcast %108 : vector<8x1xf32> to vector<8x32xf32>
    %110 = arith.subf %104, %109 : vector<8x32xf32>
    %111 = arith.mulf %110, %110 : vector<8x32xf32>
    %cst_56 = arith.constant dense<0.000000e+00> : vector<8xf32>
    %112 = vector.multi_reduction <add>, %111, %cst_56 [1] : vector<8x32xf32> to vector<8xf32>
    %113 = vector.shape_cast %112 : vector<8xf32> to vector<8x1xf32>
    %cst_57 = arith.constant 3.200000e+01 : f32
    %114 = vector.broadcast %cst_57 : f32 to vector<8x1xf32>
    %115 = arith.divf %113, %114 : vector<8x1xf32>
    %cst_58 = arith.constant 9.99999974E-6 : f32
    %116 = vector.broadcast %cst_58 : f32 to vector<8x1xf32>
    %117 = arith.addf %115, %116 : vector<8x1xf32>
    %118 = math.rsqrt %117 : vector<8x1xf32>
    %119 = vector.broadcast %118 : vector<8x1xf32> to vector<8x32xf32>
    %120 = arith.mulf %110, %119 : vector<8x32xf32>
    %121 = vector.broadcast %102 : vector<1x32xf32> to vector<8x32xf32>
    %122 = arith.mulf %120, %121 : vector<8x32xf32>
    %123 = vector.broadcast %103 : vector<1x32xf32> to vector<8x32xf32>
    %124 = arith.addf %122, %123 : vector<8x32xf32>
    %c0_59 = arith.constant 0 : index
    %c0_60 = arith.constant 0 : index
    %125 = vector.load %arg13[%c0_59, %c0_60] : memref<32x64xf32, #tpu.memory_space<vmem>>, vector<32x64xf32>
    %cst_61 = arith.constant dense<0.000000e+00> : vector<8x64xf32>
    %126 = tpu.matmul %124, %125, %cst_61 {dimension_numbers = #tpu.dot_dimension_numbers<[1], [0], [0], [1], [0, 0, 1, 1], [], []>} : vector<8x32xf32>, vector<32x64xf32>, vector<8x64xf32> -> vector<8x64xf32>
    %c0_62 = arith.constant 0 : index
    %c0_63 = arith.constant 0 : index
    %127 = vector.load %arg14[%c0_62, %c0_63] : memref<1x64xf32, #tpu.memory_space<vmem>>, vector<1x64xf32>
    %128 = vector.broadcast %127 : vector<1x64xf32> to vector<8x64xf32>
    %129 = arith.addf %126, %128 : vector<8x64xf32>
    %cst_64 = arith.constant 0.000000e+00 : f32
    %130 = vector.broadcast %cst_64 : f32 to vector<8x64xf32>
    %131 = arith.maximumf %129, %130 : vector<8x64xf32>
    %c0_65 = arith.constant 0 : index
    %c0_66 = arith.constant 0 : index
    %132 = vector.load %arg15[%c0_65, %c0_66] : memref<64x32xf32, #tpu.memory_space<vmem>>, vector<64x32xf32>
    %cst_67 = arith.constant dense<0.000000e+00> : vector<8x32xf32>
    %133 = tpu.matmul %131, %132, %cst_67 {dimension_numbers = #tpu.dot_dimension_numbers<[1], [0], [0], [1], [0, 0, 1, 1], [], []>} : vector<8x64xf32>, vector<64x32xf32>, vector<8x32xf32> -> vector<8x32xf32>
    %c0_68 = arith.constant 0 : index
    %c0_69 = arith.constant 0 : index
    %134 = vector.load %arg16[%c0_68, %c0_69] : memref<1x32xf32, #tpu.memory_space<vmem>>, vector<1x32xf32>
    %135 = vector.broadcast %134 : vector<1x32xf32> to vector<8x32xf32>
    %136 = arith.addf %133, %135 : vector<8x32xf32>
    %c0_70 = arith.constant 0 : index
    %c0_71 = arith.constant 0 : index
    %137 = vector.load %arg19[%c0_70, %c0_71] : memref<1x32xf32, #tpu.memory_space<vmem>>, vector<1x32xf32>
    %c0_72 = arith.constant 0 : index
    %c0_73 = arith.constant 0 : index
    %138 = vector.load %arg20[%c0_72, %c0_73] : memref<1x32xf32, #tpu.memory_space<vmem>>, vector<1x32xf32>
    %139 = arith.addf %124, %136 : vector<8x32xf32>
    %cst_74 = arith.constant dense<0.000000e+00> : vector<8xf32>
    %140 = vector.multi_reduction <add>, %139, %cst_74 [1] : vector<8x32xf32> to vector<8xf32>
    %141 = vector.shape_cast %140 : vector<8xf32> to vector<8x1xf32>
    %cst_75 = arith.constant 3.200000e+01 : f32
    %142 = vector.broadcast %cst_75 : f32 to vector<8x1xf32>
    %143 = arith.divf %141, %142 : vector<8x1xf32>
    %144 = vector.broadcast %143 : vector<8x1xf32> to vector<8x32xf32>
    %145 = arith.subf %139, %144 : vector<8x32xf32>
    %146 = arith.mulf %145, %145 : vector<8x32xf32>
    %cst_76 = arith.constant dense<0.000000e+00> : vector<8xf32>
    %147 = vector.multi_reduction <add>, %146, %cst_76 [1] : vector<8x32xf32> to vector<8xf32>
    %148 = vector.shape_cast %147 : vector<8xf32> to vector<8x1xf32>
    %cst_77 = arith.constant 3.200000e+01 : f32
    %149 = vector.broadcast %cst_77 : f32 to vector<8x1xf32>
    %150 = arith.divf %148, %149 : vector<8x1xf32>
    %cst_78 = arith.constant 9.99999974E-6 : f32
    %151 = vector.broadcast %cst_78 : f32 to vector<8x1xf32>
    %152 = arith.addf %150, %151 : vector<8x1xf32>
    %153 = math.rsqrt %152 : vector<8x1xf32>
    %154 = vector.broadcast %153 : vector<8x1xf32> to vector<8x32xf32>
    %155 = arith.mulf %145, %154 : vector<8x32xf32>
    %156 = vector.broadcast %137 : vector<1x32xf32> to vector<8x32xf32>
    %157 = arith.mulf %155, %156 : vector<8x32xf32>
    %158 = vector.broadcast %138 : vector<1x32xf32> to vector<8x32xf32>
    %159 = arith.addf %157, %158 : vector<8x32xf32>
    %c0_79 = arith.constant 0 : index
    %c0_80 = arith.constant 0 : index
    %c0_81 = arith.constant 0 : index
    %160 = vector.load %arg21[%c0_79, %c0_80, %c0_81] : memref<1x8x32xf32, #tpu.memory_space<vmem>>, vector<1x8x32xf32>
    %161 = vector.shape_cast %160 : vector<1x8x32xf32> to vector<8x32xf32>
    %162 = vector.shape_cast %159 : vector<8x32xf32> to vector<1x8x32xf32>
    tpu.vector_store %arg21[%c0_79, %c0_80, %c0_81], %162 {strides = array<i32>} : memref<1x8x32xf32, #tpu.memory_space<vmem>>, vector<1x8x32xf32>,
    return
  }
  func.func @transform_0(%arg0: i32) -> (i32, i32, i32) {
    %c0_i32 = arith.constant 0 : i32
    %c0_i32_0 = arith.constant 0 : i32
    %c0_i32_1 = arith.constant 0 : i32
    return %arg0, %c0_i32, %c0_i32_0 : i32, i32, i32
  }
  func.func @transform_1(%arg0: i32) -> (i32, i32, i32) {
    %c0_i32 = arith.constant 0 : i32
    %c0_i32_0 = arith.constant 0 : i32
    %c0_i32_1 = arith.constant 0 : i32
    return %arg0, %c0_i32, %c0_i32_0 : i32, i32, i32
  }
  func.func @transform_2(%arg0: i32) -> (i32, i32, i32) {
    %c0_i32 = arith.constant 0 : i32
    %c0_i32_0 = arith.constant 0 : i32
    %c0_i32_1 = arith.constant 0 : i32
    return %arg0, %c0_i32, %c0_i32_0 : i32, i32, i32
  }
  func.func @transform_3(%arg0: i32) -> (i32, i32, i32) {
    %c0_i32 = arith.constant 0 : i32
    %c0_i32_0 = arith.constant 0 : i32
    %c0_i32_1 = arith.constant 0 : i32
    return %arg0, %c0_i32, %c0_i32_0 : i32, i32, i32
  }
  func.func @transform_4(%arg0: i32) -> (i32, i32) {
    %c0_i32 = arith.constant 0 : i32
    %c0_i32_0 = arith.constant 0 : i32
    %c0_i32_1 = arith.constant 0 : i32
    return %c0_i32, %c0_i32_0 : i32, i32
  }
  func.func @transform_5(%arg0: i32) -> (i32, i32) {
    %c0_i32 = arith.constant 0 : i32
    %c0_i32_0 = arith.constant 0 : i32
    %c0_i32_1 = arith.constant 0 : i32
    return %c0_i32, %c0_i32_0 : i32, i32
  }
  func.func @transform_6(%arg0: i32) -> (i32, i32) {
    %c0_i32 = arith.constant 0 : i32
    %c0_i32_0 = arith.constant 0 : i32
    %c0_i32_1 = arith.constant 0 : i32
    return %c0_i32, %c0_i32_0 : i32, i32
  }
  func.func @transform_7(%arg0: i32) -> (i32, i32) {
    %c0_i32 = arith.constant 0 : i32
    %c0_i32_0 = arith.constant 0 : i32
    %c0_i32_1 = arith.constant 0 : i32
    return %c0_i32, %c0_i32_0 : i32, i32
  }
  func.func @transform_8(%arg0: i32) -> (i32, i32) {
    %c0_i32 = arith.constant 0 : i32
    %c0_i32_0 = arith.constant 0 : i32
    %c0_i32_1 = arith.constant 0 : i32
    return %c0_i32, %c0_i32_0 : i32, i32
  }
  func.func @transform_9(%arg0: i32) -> (i32, i32) {
    %c0_i32 = arith.constant 0 : i32
    %c0_i32_0 = arith.constant 0 : i32
    %c0_i32_1 = arith.constant 0 : i32
    return %c0_i32, %c0_i32_0 : i32, i32
  }
  func.func @transform_10(%arg0: i32) -> (i32, i32) {
    %c0_i32 = arith.constant 0 : i32
    %c0_i32_0 = arith.constant 0 : i32
    %c0_i32_1 = arith.constant 0 : i32
    return %c0_i32, %c0_i32_0 : i32, i32
  }
  func.func @transform_11(%arg0: i32) -> (i32, i32) {
    %c0_i32 = arith.constant 0 : i32
    %c0_i32_0 = arith.constant 0 : i32
    %c0_i32_1 = arith.constant 0 : i32
    return %c0_i32, %c0_i32_0 : i32, i32
  }
  func.func @transform_12(%arg0: i32) -> (i32, i32) {
    %c0_i32 = arith.constant 0 : i32
    %c0_i32_0 = arith.constant 0 : i32
    %c0_i32_1 = arith.constant 0 : i32
    return %c0_i32, %c0_i32_0 : i32, i32
  }
  func.func @transform_13(%arg0: i32) -> (i32, i32) {
    %c0_i32 = arith.constant 0 : i32
    %c0_i32_0 = arith.constant 0 : i32
    %c0_i32_1 = arith.constant 0 : i32
    return %c0_i32, %c0_i32_0 : i32, i32
  }
  func.func @transform_14(%arg0: i32) -> (i32, i32) {
    %c0_i32 = arith.constant 0 : i32
    %c0_i32_0 = arith.constant 0 : i32
    %c0_i32_1 = arith.constant 0 : i32
    return %c0_i32, %c0_i32_0 : i32, i32
  }
  func.func @transform_15(%arg0: i32) -> (i32, i32) {
    %c0_i32 = arith.constant 0 : i32
    %c0_i32_0 = arith.constant 0 : i32
    %c0_i32_1 = arith.constant 0 : i32
    return %c0_i32, %c0_i32_0 : i32, i32
  }
  func.func @transform_16(%arg0: i32) -> (i32, i32) {
    %c0_i32 = arith.constant 0 : i32
    %c0_i32_0 = arith.constant 0 : i32
    %c0_i32_1 = arith.constant 0 : i32
    return %c0_i32, %c0_i32_0 : i32, i32
  }
  func.func @transform_17(%arg0: i32) -> (i32, i32) {
    %c0_i32 = arith.constant 0 : i32
    %c0_i32_0 = arith.constant 0 : i32
    %c0_i32_1 = arith.constant 0 : i32
    return %c0_i32, %c0_i32_0 : i32, i32
  }
  func.func @transform_18(%arg0: i32) -> (i32, i32) {
    %c0_i32 = arith.constant 0 : i32
    %c0_i32_0 = arith.constant 0 : i32
    %c0_i32_1 = arith.constant 0 : i32
    return %c0_i32, %c0_i32_0 : i32, i32
  }
  func.func @transform_19(%arg0: i32) -> (i32, i32) {
    %c0_i32 = arith.constant 0 : i32
    %c0_i32_0 = arith.constant 0 : i32
    %c0_i32_1 = arith.constant 0 : i32
    return %c0_i32, %c0_i32_0 : i32, i32
  }
  func.func @transform_20(%arg0: i32) -> (i32, i32, i32) {
    %c0_i32 = arith.constant 0 : i32
    %c0_i32_0 = arith.constant 0 : i32
    %c0_i32_1 = arith.constant 0 : i32
    return %arg0, %c0_i32, %c0_i32_0 : i32, i32, i32
  }
}

</mosaic_0001>

<llo_original>
// kernel: decoder_forward.1
$region0: #{decoder_forward.1}
  #allocation0 [shape = 'u32[]', space=smem, size = 0x4, offset = 0x4, fixed_abs, tag = 'smem constant byte address 0x4 - core index']
  #allocation1 [shape = 'u32[144,128]{1,0:T(1,128)}', space=vmem, size = 0x12000, scoped, tag = 'internal scratch']
  %s0 = inlined_call_operand.vmem [shape: f32[2,8,32], index: 0, kind: input, shape index: {}]
  %s1 = inlined_call_operand.vmem [shape: f32[2,16,32], index: 1, kind: input, shape index: {}]
  %s2 = inlined_call_operand.vmem [shape: f32[2,8,32], index: 2, kind: input, shape index: {}]
  %s3 = inlined_call_operand.vmem [shape: f32[2,16,32], index: 3, kind: input, shape index: {}]
  %s4 = inlined_call_operand.vmem [shape: f32[32,32], index: 4, kind: input, shape index: {}]
  %s5 = inlined_call_operand.vmem [shape: f32[1,32], index: 5, kind: input, shape index: {}]
  %s6 = inlined_call_operand.vmem [shape: f32[32,32], index: 6, kind: input, shape index: {}]
  %s7 = inlined_call_operand.vmem [shape: f32[1,32], index: 7, kind: input, shape index: {}]
  %s8 = inlined_call_operand.vmem [shape: f32[32,32], index: 8, kind: input, shape index: {}]
  %s9 = inlined_call_operand.vmem [shape: f32[1,32], index: 9, kind: input, shape index: {}]
  %s10 = inlined_call_operand.vmem [shape: f32[32,32], index: 10, kind: input, shape index: {}]
  %s11 = inlined_call_operand.vmem [shape: f32[1,32], index: 11, kind: input, shape index: {}]
  %s12 = inlined_call_operand.vmem [shape: f32[32,64], index: 12, kind: input, shape index: {}]
  %s13 = inlined_call_operand.vmem [shape: f32[1,64], index: 13, kind: input, shape index: {}]
  %s14 = inlined_call_operand.vmem [shape: f32[64,32], index: 14, kind: input, shape index: {}]
  %s15 = inlined_call_operand.vmem [shape: f32[1,32], index: 15, kind: input, shape index: {}]
  %s16 = inlined_call_operand.vmem [shape: f32[1,32], index: 16, kind: input, shape index: {}]
  %s17 = inlined_call_operand.vmem [shape: f32[1,32], index: 17, kind: input, shape index: {}]
  %s18 = inlined_call_operand.vmem [shape: f32[1,32], index: 18, kind: input, shape index: {}]
  %s19 = inlined_call_operand.vmem [shape: f32[1,32], index: 19, kind: input, shape index: {}]
  %s20 = inlined_call_operand.vmem [shape: f32[2,8,32], index: 20, kind: output, shape index: {}]
  %s21 = sld [smem:[#allocation0]]
  $region113: #{decoder_forward.1} parent=0
    _
  %s23 = ssub.s32 1, %s21
  %s24 = scalar_select 0, %s23, %s21
  loop: start=0, step=1, limit=4
  $region2: #{decoder_forward.1} parent=0 // loop_pre_header
    _
  $region3: #{decoder_forward.1} parent=0 // loop_header
    %s26 = sphi 0, %s30
    %p27 = scmp.ge.s32.totalorder %s26, 4
    %s36 = sphi 0, %s38
    %s39 = sphi 0, %s36
    %s40 = sphi 0, %s39
    %s56 = sphi 0, %s40
    %s62 = sphi 0, %s64
    %s65 = sphi 0, %s62
    %s66 = sphi 0, %s65
    %s82 = sphi 0, %s66
    %s88 = sphi 0, %s90
    %s91 = sphi 0, %s88
    %s92 = sphi 0, %s91
    %s108 = sphi 0, %s92
    %s114 = sphi 0, %s116
    %s117 = sphi 0, %s114
    %s118 = sphi 0, %s117
    %s134 = sphi 0, %s118
    %s138 = sphi 0, %s138
    %s140 = sphi 0, %s138
    %s141 = sphi 0, %s140
    %s155 = sphi 0, %s141
    %s159 = sphi 0, %s159
    %s161 = sphi 0, %s159
    %s162 = sphi 0, %s161
    %s176 = sphi 0, %s162
    %s180 = sphi 0, %s180
    %s182 = sphi 0, %s180
    %s183 = sphi 0, %s182
    %s197 = sphi 0, %s183
    %s201 = sphi 0, %s201
    %s203 = sphi 0, %s201
    %s204 = sphi 0, %s203
    %s218 = sphi 0, %s204
    %s222 = sphi 0, %s222
    %s224 = sphi 0, %s222
    %s225 = sphi 0, %s224
    %s239 = sphi 0, %s225
    %s243 = sphi 0, %s243
    %s245 = sphi 0, %s243
    %s246 = sphi 0, %s245
    %s260 = sphi 0, %s246
    %s264 = sphi 0, %s264
    %s266 = sphi 0, %s264
    %s267 = sphi 0, %s266
    %s281 = sphi 0, %s267
    %s285 = sphi 0, %s285
    %s287 = sphi 0, %s285
    %s288 = sphi 0, %s287
    %s302 = sphi 0, %s288
    %s306 = sphi 0, %s306
    %s308 = sphi 0, %s306
    %s309 = sphi 0, %s308
    %s323 = sphi 0, %s309
    %s327 = sphi 0, %s327
    %s329 = sphi 0, %s327
    %s330 = sphi 0, %s329
    %s344 = sphi 0, %s330
    %s348 = sphi 0, %s348
    %s350 = sphi 0, %s348
    %s351 = sphi 0, %s350
    %s365 = sphi 0, %s351
    %s369 = sphi 0, %s369
    %s371 = sphi 0, %s369
    %s372 = sphi 0, %s371
    %s386 = sphi 0, %s372
    %s390 = sphi 0, %s390
    %s392 = sphi 0, %s390
    %s393 = sphi 0, %s392
    %s407 = sphi 0, %s393
    %s411 = sphi 0, %s411
    %s413 = sphi 0, %s411
    %s414 = sphi 0, %s413
    %s428 = sphi 0, %s414
    %s432 = sphi 0, %s432
    %s434 = sphi 0, %s432
    %s435 = sphi 0, %s434
    %s449 = sphi 0, %s435
    %s453 = sphi 0, %s453
    %s455 = sphi 0, %s453
    %s456 = sphi 0, %s455
    %s470 = sphi 0, %s456
    %s476 = sphi 0, %s478
    %s479 = sphi 0, %s476
    %s480 = sphi 0, %s479
    %s496 = sphi 0, %s480
  $region4: #{decoder_forward.1} parent=0 // loop_header_branch
    %29 = sbr.rel (%p27) target = $region8
  $region5: #{decoder_forward.1} parent=0 // loop_body
    %s31 = ssub.s32 %s26, 1
    %s32 = ssub.s32 %s26, 2
    %s33 = sadd.s32 %s26, 1
    %s34 = ssub.s32 %s26, %s33
    %p35 = scmp.eq.s32.totalorder %s34, 0
    %s37 = sadd.s32 %s36, 1
    %s38 = scalar_select %p35, %s36, %s37
    %p41 = pneg %p35
    %p42 = scmp.eq.s32.totalorder %s26, 1
    %p43 = por %p41, %p42
    %p44 = scmp.ne.s32.totalorder %s36, %s39
    %p45 = scmp.eq.s32.totalorder %s26, 0
    %p46 = por %p44, %p45
    %p47 = scmp.ne.s32.totalorder %s36, %s39
    %p48 = scmp.eq.s32.totalorder %s31, 1
    %p49 = por %p47, %p48
    %p50 = scmp.ne.s32.totalorder %s39, %s40
    %p51 = scmp.eq.s32.totalorder %s31, 0
    %p52 = por %p50, %p51
    %p53 = scmp.ne.s32.totalorder %s39, %s40
    %p54 = scmp.eq.s32.totalorder %s32, 1
    %p55 = por %p53, %p54
    %p57 = scmp.ne.s32.totalorder %s40, %s56
    %p58 = scmp.eq.s32.totalorder %s32, 0
    %p59 = por %p57, %p58
    %s60 = ssub.s32 %s26, %s33
    %p61 = scmp.eq.s32.totalorder %s60, 0
    %s63 = sadd.s32 %s62, 1
    %s64 = scalar_select %p61, %s62, %s63
    %p67 = pneg %p61
    %p68 = scmp.eq.s32.totalorder %s26, 1
    %p69 = por %p67, %p68
    %p70 = scmp.ne.s32.totalorder %s62, %s65
    %p71 = scmp.eq.s32.totalorder %s26, 0
    %p72 = por %p70, %p71
    %p73 = scmp.ne.s32.totalorder %s62, %s65
    %p74 = scmp.eq.s32.totalorder %s31, 1
    %p75 = por %p73, %p74
    %p76 = scmp.ne.s32.totalorder %s65, %s66
    %p77 = scmp.eq.s32.totalorder %s31, 0
    %p78 = por %p76, %p77
    %p79 = scmp.ne.s32.totalorder %s65, %s66
    %p80 = scmp.eq.s32.totalorder %s32, 1
    %p81 = por %p79, %p80
    %p83 = scmp.ne.s32.totalorder %s66, %s82
    %p84 = scmp.eq.s32.totalorder %s32, 0
    %p85 = por %p83, %p84
    %s86 = ssub.s32 %s26, %s33
    %p87 = scmp.eq.s32.totalorder %s86, 0
    %s89 = sadd.s32 %s88, 1
    %s90 = scalar_select %p87, %s88, %s89
    %p93 = pneg %p87
    %p94 = scmp.eq.s32.totalorder %s26, 1
    %p95 = por %p93, %p94
    %p96 = scmp.ne.s32.totalorder %s88, %s91
    %p97 = scmp.eq.s32.totalorder %s26, 0
    %p98 = por %p96, %p97
    %p99 = scmp.ne.s32.totalorder %s88, %s91
    %p100 = scmp.eq.s32.totalorder %s31, 1
    %p101 = por %p99, %p100
    %p102 = scmp.ne.s32.totalorder %s91, %s92
    %p103 = scmp.eq.s32.totalorder %s31, 0
    %p104 = por %p102, %p103
    %p105 = scmp.ne.s32.totalorder %s91, %s92
    %p106 = scmp.eq.s32.totalorder %s32, 1
    %p107 = por %p105, %p106
    %p109 = scmp.ne.s32.totalorder %s92, %s108
    %p110 = scmp.eq.s32.totalorder %s32, 0
    %p111 = por %p109, %p110
    %s112 = ssub.s32 %s26, %s33
    %p113 = scmp.eq.s32.totalorder %s112, 0
    %s115 = sadd.s32 %s114, 1
    %s116 = scalar_select %p113, %s114, %s115
    %p119 = pneg %p113
    %p120 = scmp.eq.s32.totalorder %s26, 1
    %p121 = por %p119, %p120
    %p122 = scmp.ne.s32.totalorder %s114, %s117
    %p123 = scmp.eq.s32.totalorder %s26, 0
    %p124 = por %p122, %p123
    %p125 = scmp.ne.s32.totalorder %s114, %s117
    %p126 = scmp.eq.s32.totalorder %s31, 1
    %p127 = por %p125, %p126
    %p128 = scmp.ne.s32.totalorder %s117, %s118
    %p129 = scmp.eq.s32.totalorder %s31, 0
    %p130 = por %p128, %p129
    %p131 = scmp.ne.s32.totalorder %s117, %s118
    %p132 = scmp.eq.s32.totalorder %s32, 1
    %p133 = por %p131, %p132
    %p135 = scmp.ne.s32.totalorder %s118, %s134
    %p136 = scmp.eq.s32.totalorder %s32, 0
    %p137 = por %p135, %p136
    %s139 = sadd.s32 %s138, 1
    %p142 = scmp.eq.s32.totalorder %s26, 1
    %p143 = scmp.ne.s32.totalorder %s138, %s140
    %p144 = scmp.eq.s32.totalorder %s26, 0
    %p145 = por %p143, %p144
    %p146 = scmp.ne.s32.totalorder %s138, %s140
    %p147 = scmp.eq.s32.totalorder %s31, 1
    %p148 = por %p146, %p147
    %p149 = scmp.ne.s32.totalorder %s140, %s141
    %p150 = scmp.eq.s32.totalorder %s31, 0
    %p151 = por %p149, %p150
    %p152 = scmp.ne.s32.totalorder %s140, %s141
    %p153 = scmp.eq.s32.totalorder %s32, 1
    %p154 = por %p152, %p153
    %p156 = scmp.ne.s32.totalorder %s141, %s155
    %p157 = scmp.eq.s32.totalorder %s32, 0
    %p158 = por %p156, %p157
    %s160 = sadd.s32 %s159, 1
    %p163 = scmp.eq.s32.totalorder %s26, 1
    %p164 = scmp.ne.s32.totalorder %s159, %s161
    %p165 = scmp.eq.s32.totalorder %s26, 0
    %p166 = por %p164, %p165
    %p167 = scmp.ne.s32.totalorder %s159, %s161
    %p168 = scmp.eq.s32.totalorder %s31, 1
    %p169 = por %p167, %p168
    %p170 = scmp.ne.s32.totalorder %s161, %s162
    %p171 = scmp.eq.s32.totalorder %s31, 0
    %p172 = por %p170, %p171
    %p173 = scmp.ne.s32.totalorder %s161, %s162
    %p174 = scmp.eq.s32.totalorder %s32, 1
    %p175 = por %p173, %p174
    %p177 = scmp.ne.s32.totalorder %s162, %s176
    %p178 = scmp.eq.s32.totalorder %s32, 0
    %p179 = por %p177, %p178
    %s181 = sadd.s32 %s180, 1
    %p184 = scmp.eq.s32.totalorder %s26, 1
    %p185 = scmp.ne.s32.totalorder %s180, %s182
    %p186 = scmp.eq.s32.totalorder %s26, 0
    %p187 = por %p185, %p186
    %p188 = scmp.ne.s32.totalorder %s180, %s182
    %p189 = scmp.eq.s32.totalorder %s31, 1
    %p190 = por %p188, %p189
    %p191 = scmp.ne.s32.totalorder %s182, %s183
    %p192 = scmp.eq.s32.totalorder %s31, 0
    %p193 = por %p191, %p192
    %p194 = scmp.ne.s32.totalorder %s182, %s183
    %p195 = scmp.eq.s32.totalorder %s32, 1
    %p196 = por %p194, %p195
    %p198 = scmp.ne.s32.totalorder %s183, %s197
    %p199 = scmp.eq.s32.totalorder %s32, 0
    %p200 = por %p198, %p199
    %s202 = sadd.s32 %s201, 1
    %p205 = scmp.eq.s32.totalorder %s26, 1
    %p206 = scmp.ne.s32.totalorder %s201, %s203
    %p207 = scmp.eq.s32.totalorder %s26, 0
    %p208 = por %p206, %p207
    %p209 = scmp.ne.s32.totalorder %s201, %s203
    %p210 = scmp.eq.s32.totalorder %s31, 1
    %p211 = por %p209, %p210
    %p212 = scmp.ne.s32.totalorder %s203, %s204
    %p213 = scmp.eq.s32.totalorder %s31, 0
    %p214 = por %p212, %p213
    %p215 = scmp.ne.s32.totalorder %s203, %s204
    %p216 = scmp.eq.s32.totalorder %s32, 1
    %p217 = por %p215, %p216
    %p219 = scmp.ne.s32.totalorder %s204, %s218
    %p220 = scmp.eq.s32.totalorder %s32, 0
    %p221 = por %p219, %p220
    %s223 = sadd.s32 %s222, 1
    %p226 = scmp.eq.s32.totalorder %s26, 1
    %p227 = scmp.ne.s32.totalorder %s222, %s224
    %p228 = scmp.eq.s32.totalorder %s26, 0
    %p229 = por %p227, %p228
    %p230 = scmp.ne.s32.totalorder %s222, %s224
    %p231 = scmp.eq.s32.totalorder %s31, 1
    %p232 = por %p230, %p231
    %p233 = scmp.ne.s32.totalorder %s224, %s225
    %p234 = scmp.eq.s32.totalorder %s31, 0
    %p235 = por %p233, %p234
    %p236 = scmp.ne.s32.totalorder %s224, %s225
    %p237 = scmp.eq.s32.totalorder %s32, 1
    %p238 = por %p236, %p237
    %p240 = scmp.ne.s32.totalorder %s225, %s239
    %p241 = scmp.eq.s32.totalorder %s32, 0
    %p242 = por %p240, %p241
    %s244 = sadd.s32 %s243, 1
    %p247 = scmp.eq.s32.totalorder %s26, 1
    %p248 = scmp.ne.s32.totalorder %s243, %s245
    %p249 = scmp.eq.s32.totalorder %s26, 0
    %p250 = por %p248, %p249
    %p251 = scmp.ne.s32.totalorder %s243, %s245
    %p252 = scmp.eq.s32.totalorder %s31, 1
    %p253 = por %p251, %p252
    %p254 = scmp.ne.s32.totalorder %s245, %s246
    %p255 = scmp.eq.s32.totalorder %s31, 0
    %p256 = por %p254, %p255
    %p257 = scmp.ne.s32.totalorder %s245, %s246
    %p258 = scmp.eq.s32.totalorder %s32, 1
    %p259 = por %p257, %p258
    %p261 = scmp.ne.s32.totalorder %s246, %s260
    %p262 = scmp.eq.s32.totalorder %s32, 0
    %p263 = por %p261, %p262
    %s265 = sadd.s32 %s264, 1
    %p268 = scmp.eq.s32.totalorder %s26, 1
    %p269 = scmp.ne.s32.totalorder %s264, %s266
    %p270 = scmp.eq.s32.totalorder %s26, 0
    %p271 = por %p269, %p270
    %p272 = scmp.ne.s32.totalorder %s264, %s266
    %p273 = scmp.eq.s32.totalorder %s31, 1
    %p274 = por %p272, %p273
    %p275 = scmp.ne.s32.totalorder %s266, %s267
    %p276 = scmp.eq.s32.totalorder %s31, 0
    %p277 = por %p275, %p276
    %p278 = scmp.ne.s32.totalorder %s266, %s267
    %p279 = scmp.eq.s32.totalorder %s32, 1
    %p280 = por %p278, %p279
    %p282 = scmp.ne.s32.totalorder %s267, %s281
    %p283 = scmp.eq.s32.totalorder %s32, 0
    %p284 = por %p282, %p283
    %s286 = sadd.s32 %s285, 1
    %p289 = scmp.eq.s32.totalorder %s26, 1
    %p290 = scmp.ne.s32.totalorder %s285, %s287
    %p291 = scmp.eq.s32.totalorder %s26, 0
    %p292 = por %p290, %p291
    %p293 = scmp.ne.s32.totalorder %s285, %s287
    %p294 = scmp.eq.s32.totalorder %s31, 1
    %p295 = por %p293, %p294
    %p296 = scmp.ne.s32.totalorder %s287, %s288
    %p297 = scmp.eq.s32.totalorder %s31, 0
    %p298 = por %p296, %p297
    %p299 = scmp.ne.s32.totalorder %s287, %s288
    %p300 = scmp.eq.s32.totalorder %s32, 1
    %p301 = por %p299, %p300
    %p303 = scmp.ne.s32.totalorder %s288, %s302
    %p304 = scmp.eq.s32.totalorder %s32, 0
    %p305 = por %p303, %p304
    %s307 = sadd.s32 %s306, 1
    %p310 = scmp.eq.s32.totalorder %s26, 1
    %p311 = scmp.ne.s32.totalorder %s306, %s308
    %p312 = scmp.eq.s32.totalorder %s26, 0
    %p313 = por %p311, %p312
    %p314 = scmp.ne.s32.totalorder %s306, %s308
    %p315 = scmp.eq.s32.totalorder %s31, 1
    %p316 = por %p314, %p315
    %p317 = scmp.ne.s32.totalorder %s308, %s309
    %p318 = scmp.eq.s32.totalorder %s31, 0
    %p319 = por %p317, %p318
    %p320 = scmp.ne.s32.totalorder %s308, %s309
    %p321 = scmp.eq.s32.totalorder %s32, 1
    %p322 = por %p320, %p321
    %p324 = scmp.ne.s32.totalorder %s309, %s323
    %p325 = scmp.eq.s32.totalorder %s32, 0
    %p326 = por %p324, %p325
    %s328 = sadd.s32 %s327, 1
    %p331 = scmp.eq.s32.totalorder %s26, 1
    %p332 = scmp.ne.s32.totalorder %s327, %s329
    %p333 = scmp.eq.s32.totalorder %s26, 0
    %p334 = por %p332, %p333
    %p335 = scmp.ne.s32.totalorder %s327, %s329
    %p336 = scmp.eq.s32.totalorder %s31, 1
    %p337 = por %p335, %p336
    %p338 = scmp.ne.s32.totalorder %s329, %s330
    %p339 = scmp.eq.s32.totalorder %s31, 0
    %p340 = por %p338, %p339
    %p341 = scmp.ne.s32.totalorder %s329, %s330
    %p342 = scmp.eq.s32.totalorder %s32, 1
    %p343 = por %p341, %p342
    %p345 = scmp.ne.s32.totalorder %s330, %s344
    %p346 = scmp.eq.s32.totalorder %s32, 0
    %p347 = por %p345, %p346
    %s349 = sadd.s32 %s348, 1
    %p352 = scmp.eq.s32.totalorder %s26, 1
    %p353 = scmp.ne.s32.totalorder %s348, %s350
    %p354 = scmp.eq.s32.totalorder %s26, 0
    %p355 = por %p353, %p354
    %p356 = scmp.ne.s32.totalorder %s348, %s350
    %p357 = scmp.eq.s32.totalorder %s31, 1
    %p358 = por %p356, %p357
    %p359 = scmp.ne.s32.totalorder %s350, %s351
    %p360 = scmp.eq.s32.totalorder %s31, 0
    %p361 = por %p359, %p360
    %p362 = scmp.ne.s32.totalorder %s350, %s351
    %p363 = scmp.eq.s32.totalorder %s32, 1
    %p364 = por %p362, %p363
    %p366 = scmp.ne.s32.totalorder %s351, %s365
    %p367 = scmp.eq.s32.totalorder %s32, 0
    %p368 = por %p366, %p367
    %s370 = sadd.s32 %s369, 1
    %p373 = scmp.eq.s32.totalorder %s26, 1
    %p374 = scmp.ne.s32.totalorder %s369, %s371
    %p375 = scmp.eq.s32.totalorder %s26, 0
    %p376 = por %p374, %p375
    %p377 = scmp.ne.s32.totalorder %s369, %s371
    %p378 = scmp.eq.s32.totalorder %s31, 1
    %p379 = por %p377, %p378
    %p380 = scmp.ne.s32.totalorder %s371, %s372
    %p381 = scmp.eq.s32.totalorder %s31, 0
    %p382 = por %p380, %p381
    %p383 = scmp.ne.s32.totalorder %s371, %s372
    %p384 = scmp.eq.s32.totalorder %s32, 1
    %p385 = por %p383, %p384
    %p387 = scmp.ne.s32.totalorder %s372, %s386
    %p388 = scmp.eq.s32.totalorder %s32, 0
    %p389 = por %p387, %p388
    %s391 = sadd.s32 %s390, 1
    %p394 = scmp.eq.s32.totalorder %s26, 1
    %p395 = scmp.ne.s32.totalorder %s390, %s392
    %p396 = scmp.eq.s32.totalorder %s26, 0
    %p397 = por %p395, %p396
    %p398 = scmp.ne.s32.totalorder %s390, %s392
    %p399 = scmp.eq.s32.totalorder %s31, 1
    %p400 = por %p398, %p399
    %p401 = scmp.ne.s32.totalorder %s392, %s393
    %p402 = scmp.eq.s32.totalorder %s31, 0
    %p403 = por %p401, %p402
    %p404 = scmp.ne.s32.totalorder %s392, %s393
    %p405 = scmp.eq.s32.totalorder %s32, 1
    %p406 = por %p404, %p405
    %p408 = scmp.ne.s32.totalorder %s393, %s407
    %p409 = scmp.eq.s32.totalorder %s32, 0
    %p410 = por %p408, %p409
    %s412 = sadd.s32 %s411, 1
    %p415 = scmp.eq.s32.totalorder %s26, 1
    %p416 = scmp.ne.s32.totalorder %s411, %s413
    %p417 = scmp.eq.s32.totalorder %s26, 0
    %p418 = por %p416, %p417
    %p419 = scmp.ne.s32.totalorder %s411, %s413
    %p420 = scmp.eq.s32.totalorder %s31, 1
    %p421 = por %p419, %p420
    %p422 = scmp.ne.s32.totalorder %s413, %s414
    %p423 = scmp.eq.s32.totalorder %s31, 0
    %p424 = por %p422, %p423
    %p425 = scmp.ne.s32.totalorder %s413, %s414
    %p426 = scmp.eq.s32.totalorder %s32, 1
    %p427 = por %p425, %p426
    %p429 = scmp.ne.s32.totalorder %s414, %s428
    %p430 = scmp.eq.s32.totalorder %s32, 0
    %p431 = por %p429, %p430
    %s433 = sadd.s32 %s432, 1
    %p436 = scmp.eq.s32.totalorder %s26, 1
    %p437 = scmp.ne.s32.totalorder %s432, %s434
    %p438 = scmp.eq.s32.totalorder %s26, 0
    %p439 = por %p437, %p438
    %p440 = scmp.ne.s32.totalorder %s432, %s434
    %p441 = scmp.eq.s32.totalorder %s31, 1
    %p442 = por %p440, %p441
    %p443 = scmp.ne.s32.totalorder %s434, %s435
    %p444 = scmp.eq.s32.totalorder %s31, 0
    %p445 = por %p443, %p444
    %p446 = scmp.ne.s32.totalorder %s434, %s435
    %p447 = scmp.eq.s32.totalorder %s32, 1
    %p448 = por %p446, %p447
    %p450 = scmp.ne.s32.totalorder %s435, %s449
    %p451 = scmp.eq.s32.totalorder %s32, 0
    %p452 = por %p450, %p451
    %s454 = sadd.s32 %s453, 1
    %p457 = scmp.eq.s32.totalorder %s26, 1
    %p458 = scmp.ne.s32.totalorder %s453, %s455
    %p459 = scmp.eq.s32.totalorder %s26, 0
    %p460 = por %p458, %p459
    %p461 = scmp.ne.s32.totalorder %s453, %s455
    %p462 = scmp.eq.s32.totalorder %s31, 1
    %p463 = por %p461, %p462
    %p464 = scmp.ne.s32.totalorder %s455, %s456
    %p465 = scmp.eq.s32.totalorder %s31, 0
    %p466 = por %p464, %p465
    %p467 = scmp.ne.s32.totalorder %s455, %s456
    %p468 = scmp.eq.s32.totalorder %s32, 1
    %p469 = por %p467, %p468
    %p471 = scmp.ne.s32.totalorder %s456, %s470
    %p472 = scmp.eq.s32.totalorder %s32, 0
    %p473 = por %p471, %p472
    %s474 = ssub.s32 %s26, %s33
    %p475 = scmp.eq.s32.totalorder %s474, 0
    %s477 = sadd.s32 %s476, 1
    %s478 = scalar_select %p475, %s476, %s477
    %p481 = pneg %p475
    %p482 = scmp.eq.s32.totalorder %s26, 1
    %p483 = por %p481, %p482
    %p484 = scmp.ne.s32.totalorder %s476, %s479
    %p485 = scmp.eq.s32.totalorder %s26, 0
    %p486 = por %p484, %p485
    %p487 = scmp.ne.s32.totalorder %s476, %s479
    %p488 = scmp.eq.s32.totalorder %s31, 1
    %p489 = por %p487, %p488
    %p490 = scmp.ne.s32.totalorder %s479, %s480
    %p491 = scmp.eq.s32.totalorder %s31, 0
    %p492 = por %p490, %p491
    %p493 = scmp.ne.s32.totalorder %s479, %s480
    %p494 = scmp.eq.s32.totalorder %s32, 1
    %p495 = por %p493, %p494
    %p497 = scmp.ne.s32.totalorder %s480, %s496
    %p498 = scmp.eq.s32.totalorder %s32, 0
    %p499 = por %p497, %p498
    %p500 = scmp.le.s32.totalorder 1, %s26
    %p501 = scmp.lt.s32.totalorder %s26, 3
    %p502 = pnand %p500, %p501
    %p503 = pneg %p502
    // Predicated region
    $region9: #{decoder_forward.1} parent=5 // pred_check
      _
    $region10: #{decoder_forward.1} parent=5 // pred_check_branch
      %505 = sbr.rel (%p502) target = $region12
    $region11: #{decoder_forward.1} parent=5 // pred_region
      %s506 = ssub.s32 %s26, 1
      // Predicated region
      $region13: #{decoder_forward.1} parent=11 // pred_check
        %p507 = pneg %p151
      $region14: #{decoder_forward.1} parent=11 // pred_check_branch
        %509 = sbr.rel (%p507) target = $region16
      $region15: #{decoder_forward.1} parent=11 // pred_region
        _
      $region16: #{decoder_forward.1} parent=11 // pred_fallthru
        _
      // Predicated region
      $region17: #{decoder_forward.1} parent=11 // pred_check
        %p510 = pneg %p172
      $region18: #{decoder_forward.1} parent=11 // pred_check_branch
        %512 = sbr.rel (%p510) target = $region20
      $region19: #{decoder_forward.1} parent=11 // pred_region
        _
      $region20: #{decoder_forward.1} parent=11 // pred_fallthru
        _
      // Predicated region
      $region21: #{decoder_forward.1} parent=11 // pred_check
        %p513 = pneg %p193
      $region22: #{decoder_forward.1} parent=11 // pred_check_branch
        %515 = sbr.rel (%p513) target = $region24
      $region23: #{decoder_forward.1} parent=11 // pred_region
        _
      $region24: #{decoder_forward.1} parent=11 // pred_fallthru
        _
      // Predicated region
      $region25: #{decoder_forward.1} parent=11 // pred_check
        %p516 = pneg %p214
      $region26: #{decoder_forward.1} parent=11 // pred_check_branch
        %518 = sbr.rel (%p516) target = $region28
      $region27: #{decoder_forward.1} parent=11 // pred_region
        _
      $region28: #{decoder_forward.1} parent=11 // pred_fallthru
        _
      // Predicated region
      $region29: #{decoder_forward.1} parent=11 // pred_check
        %p519 = pneg %p235
      $region30: #{decoder_forward.1} parent=11 // pred_check_branch
        %521 = sbr.rel (%p519) target = $region32
      $region31: #{decoder_forward.1} parent=11 // pred_region
        _
      $region32: #{decoder_forward.1} parent=11 // pred_fallthru
        _
      // Predicated region
      $region33: #{decoder_forward.1} parent=11 // pred_check
        %p522 = pneg %p256
      $region34: #{decoder_forward.1} parent=11 // pred_check_branch
        %524 = sbr.rel (%p522) target = $region36
      $region35: #{decoder_forward.1} parent=11 // pred_region
        _
      $region36: #{decoder_forward.1} parent=11 // pred_fallthru
        _
      // Predicated region
      $region37: #{decoder_forward.1} parent=11 // pred_check
        %p525 = pneg %p277
      $region38: #{decoder_forward.1} parent=11 // pred_check_branch
        %527 = sbr.rel (%p525) target = $region40
      $region39: #{decoder_forward.1} parent=11 // pred_region
        _
      $region40: #{decoder_forward.1} parent=11 // pred_fallthru
        _
      // Predicated region
      $region41: #{decoder_forward.1} parent=11 // pred_check
        %p528 = pneg %p298
      $region42: #{decoder_forward.1} parent=11 // pred_check_branch
        %530 = sbr.rel (%p528) target = $region44
      $region43: #{decoder_forward.1} parent=11 // pred_region
        _
      $region44: #{decoder_forward.1} parent=11 // pred_fallthru
        _
      // Predicated region
      $region45: #{decoder_forward.1} parent=11 // pred_check
        %p531 = pneg %p319
      $region46: #{decoder_forward.1} parent=11 // pred_check_branch
        %533 = sbr.rel (%p531) target = $region48
      $region47: #{decoder_forward.1} parent=11 // pred_region
        _
      $region48: #{decoder_forward.1} parent=11 // pred_fallthru
        _
      // Predicated region
      $region49: #{decoder_forward.1} parent=11 // pred_check
        %p534 = pneg %p340
      $region50: #{decoder_forward.1} parent=11 // pred_check_branch
        %536 = sbr.rel (%p534) target = $region52
      $region51: #{decoder_forward.1} parent=11 // pred_region
        _
      $region52: #{decoder_forward.1} parent=11 // pred_fallthru
        _
      // Predicated region
      $region53: #{decoder_forward.1} parent=11 // pred_check
        %p537 = pneg %p361
      $region54: #{decoder_forward.1} parent=11 // pred_check_branch
        %539 = sbr.rel (%p537) target = $region56
      $region55: #{decoder_forward.1} parent=11 // pred_region
        _
      $region56: #{decoder_forward.1} parent=11 // pred_fallthru
        _
      // Predicated region
      $region57: #{decoder_forward.1} parent=11 // pred_check
        %p540 = pneg %p382
      $region58: #{decoder_forward.1} parent=11 // pred_check_branch
        %542 = sbr.rel (%p540) target = $region60
      $region59: #{decoder_forward.1} parent=11 // pred_region
        _
      $region60: #{decoder_forward.1} parent=11 // pred_fallthru
        _
      // Predicated region
      $region61: #{decoder_forward.1} parent=11 // pred_check
        %p543 = pneg %p403
      $region62: #{decoder_forward.1} parent=11 // pred_check_branch
        %545 = sbr.rel (%p543) target = $region64
      $region63: #{decoder_forward.1} parent=11 // pred_region
        _
      $region64: #{decoder_forward.1} parent=11 // pred_fallthru
        _
      // Predicated region
      $region65: #{decoder_forward.1} parent=11 // pred_check
        %p546 = pneg %p424
      $region66: #{decoder_forward.1} parent=11 // pred_check_branch
        %548 = sbr.rel (%p546) target = $region68
      $region67: #{decoder_forward.1} parent=11 // pred_region
        _
      $region68: #{decoder_forward.1} parent=11 // pred_fallthru
        _
      // Predicated region
      $region69: #{decoder_forward.1} parent=11 // pred_check
        %p549 = pneg %p445
      $region70: #{decoder_forward.1} parent=11 // pred_check_branch
        %551 = sbr.rel (%p549) target = $region72
      $region71: #{decoder_forward.1} parent=11 // pred_region
        _
      $region72: #{decoder_forward.1} parent=11 // pred_fallthru
        _
      // Predicated region
      $region73: #{decoder_forward.1} parent=11 // pred_check
        %p552 = pneg %p466
      $region74: #{decoder_forward.1} parent=11 // pred_check_branch
        %554 = sbr.rel (%p552) target = $region76
      $region75: #{decoder_forward.1} parent=11 // pred_region
        _
      $region76: #{decoder_forward.1} parent=11 // pred_fallthru
        _
    $region12: #{decoder_forward.1} parent=5 // pred_fallthru
      _
    %p555 = scmp.lt.s32.totalorder %s26, 2
    // Predicated region
    $region77: #{decoder_forward.1} parent=5 // pred_check
      %p556 = pneg %p555
    $region78: #{decoder_forward.1} parent=5 // pred_check_branch
      %558 = sbr.rel (%p556) target = $region80
    $region79: #{decoder_forward.1} parent=5 // pred_region
      // Predicated region
      $region81: #{decoder_forward.1} parent=79 // pred_check
        %p559 = pneg %p46
      $region82: #{decoder_forward.1} parent=79 // pred_check_branch
        %561 = sbr.rel (%p559) target = $region84
      $region83: #{decoder_forward.1} parent=79 // pred_region
        %p562 = scmp.lt.s32.totalorder %s26, 1
        %s563 = scalar_select %p562, %s26, 1
        %s564 = smul.addr %s563, 8
        %s565 = scalar_lea.vmem %s0, %s564
      $region84: #{decoder_forward.1} parent=79 // pred_fallthru
        _
      // Predicated region
      $region85: #{decoder_forward.1} parent=79 // pred_check
        %p566 = pneg %p72
      $region86: #{decoder_forward.1} parent=79 // pred_check_branch
        %568 = sbr.rel (%p566) target = $region88
      $region87: #{decoder_forward.1} parent=79 // pred_region
        %p569 = scmp.lt.s32.totalorder %s26, 1
        %s570 = scalar_select %p569, %s26, 1
        %s571 = smul.addr %s570, 2
        %s572 = smul.addr %s571, 8
        %s573 = scalar_lea.vmem %s1, %s572
      $region88: #{decoder_forward.1} parent=79 // pred_fallthru
        _
      // Predicated region
      $region89: #{decoder_forward.1} parent=79 // pred_check
        %p574 = pneg %p98
      $region90: #{decoder_forward.1} parent=79 // pred_check_branch
        %576 = sbr.rel (%p574) target = $region92
      $region91: #{decoder_forward.1} parent=79 // pred_region
        %p577 = scmp.lt.s32.totalorder %s26, 1
        %s578 = scalar_select %p577, %s26, 1
        %s579 = smul.addr %s578, 8
        %s580 = scalar_lea.vmem %s2, %s579
      $region92: #{decoder_forward.1} parent=79 // pred_fallthru
        _
      // Predicated region
      $region93: #{decoder_forward.1} parent=79 // pred_check
        %p581 = pneg %p124
      $region94: #{decoder_forward.1} parent=79 // pred_check_branch
        %583 = sbr.rel (%p581) target = $region96
      $region95: #{decoder_forward.1} parent=79 // pred_region
        %p584 = scmp.lt.s32.totalorder %s26, 1
        %s585 = scalar_select %p584, %s26, 1
        %s586 = smul.addr %s585, 2
        %s587 = smul.addr %s586, 8
        %s588 = scalar_lea.vmem %s3, %s587
      $region96: #{decoder_forward.1} parent=79 // pred_fallthru
        _
    $region80: #{decoder_forward.1} parent=5 // pred_fallthru
      _
    %p589 = scmp.le.s32.totalorder 1, %s26
    %p590 = scmp.lt.s32.totalorder %s26, 3
    %p591 = pnand %p589, %p590
    %p592 = pneg %p591
    // Predicated region
    $region97: #{decoder_forward.1} parent=5 // pred_check
      _
    $region98: #{decoder_forward.1} parent=5 // pred_check_branch
      %594 = sbr.rel (%p591) target = $region100
    $region99: #{decoder_forward.1} parent=5 // pred_region
      %s595 = ssub.s32 %s26, 1
      %p596 = scmp.lt.s32.totalorder %s31, 1
      %s597 = scalar_select %p596, %s31, 1
      %s598 = smul.addr %s597, 8
      %s599 = scalar_lea.vmem %s0, %s598
      %p600 = pneg %p52
      %p601 = pneg %p49
      %p602 = scmp.lt.s32.totalorder %s31, 1
      %s603 = scalar_select %p602, %s31, 1
      %s604 = smul.addr %s603, 2
      %s605 = smul.addr %s604, 8
      %s606 = scalar_lea.vmem %s1, %s605
      %p607 = pneg %p78
      %p608 = pneg %p75
      %p609 = scmp.lt.s32.totalorder %s31, 1
      %s610 = scalar_select %p609, %s31, 1
      %s611 = smul.addr %s610, 8
      %s612 = scalar_lea.vmem %s2, %s611
      %p613 = pneg %p104
      %p614 = pneg %p101
      %p615 = scmp.lt.s32.totalorder %s31, 1
      %s616 = scalar_select %p615, %s31, 1
      %s617 = smul.addr %s616, 2
      %s618 = smul.addr %s617, 8
      %s619 = scalar_lea.vmem %s3, %s618
      %p620 = pneg %p130
      %p621 = pneg %p127
      %p622 = pneg %p151
      %p623 = pneg %p148
      %p624 = pneg %p172
      %p625 = pneg %p169
      %p626 = pneg %p193
      %p627 = pneg %p190
      %p628 = pneg %p214
      %p629 = pneg %p211
      %p630 = pneg %p235
      %p631 = pneg %p232
      %p632 = pneg %p256
      %p633 = pneg %p253
      %p634 = pneg %p277
      %p635 = pneg %p274
      %p636 = pneg %p298
      %p637 = pneg %p295
      %p638 = pneg %p319
      %p639 = pneg %p316
      %p640 = pneg %p340
      %p641 = pneg %p337
      %p642 = pneg %p361
      %p643 = pneg %p358
      %p644 = pneg %p382
      %p645 = pneg %p379
      %p646 = pneg %p403
      %p647 = pneg %p400
      %p648 = pneg %p424
      %p649 = pneg %p421
      %p650 = pneg %p445
      %p651 = pneg %p442
      %p652 = pneg %p466
      %p653 = pneg %p463
      %p654 = pneg %p492
      %p655 = pneg %p489
      %p656 = scmp.lt.s32.totalorder %s31, 1
      %s657 = scalar_select %p656, %s31, 1
      %s658 = smul.addr %s657, 8
      %s659 = scalar_lea.vmem %s20, %s658
      %p660 = scmp.lt.s32.totalorder %s31, 1
      %s661 = scalar_select %p660, %s31, 1
      %s662 = smul.addr %s661, 8
      %s663 = scalar_lea.vmem %s0, %s662
      %p664 = scmp.lt.s32.totalorder %s31, 1
      %s665 = scalar_select %p664, %s31, 1
      %s666 = smul.addr %s665, 2
      %s667 = smul.addr %s666, 8
      %s668 = scalar_lea.vmem %s1, %s667
      %p669 = scmp.lt.s32.totalorder %s31, 1
      %s670 = scalar_select %p669, %s31, 1
      %s671 = smul.addr %s670, 8
      %s672 = scalar_lea.vmem %s2, %s671
      %p673 = scmp.lt.s32.totalorder %s31, 1
      %s674 = scalar_select %p673, %s31, 1
      %s675 = smul.addr %s674, 2
      %s676 = smul.addr %s675, 8
      %s677 = scalar_lea.vmem %s3, %s676
      %p678 = scmp.lt.s32.totalorder %s31, 1
      %s679 = scalar_select %p678, %s31, 1
      %s680 = smul.addr %s679, 8
      %s681 = scalar_lea.vmem %s20, %s680
      %v682 = vld [vmem:[%s663] sm:$0xff]
      %v683 = vld [vmem:[%s668] sm:$0xff]
      %v684 = vld [vmem:[%s668 + $0x8] sm:$0xff]
      %v685 = vld [vmem:[%s672] sm:$0xff]
      %v686 = vadd.f32 %v682, %v685
      %v687 = vld [vmem:[%s4] sm:$0xff]
      %v688 = vld [vmem:[%s4 + $0x8] sm:$0xff]
      %v689 = vld [vmem:[%s4 + $0x10] sm:$0xff]
      %v690 = vld [vmem:[%s4 + $0x18] sm:$0xff]
      %v691 = vld [vmem:[%s5] sm:$0x1]
      %v693 = vlaneseq
      %v694 = vshrl.u32 %v693, 7
      %v695 = vsub.s32 0, %v694
      %v696 = vrot.slane %v691, %v695
      %vm698 = vcmask 261120
      %v700 = vsel %vm698, %v686, 0
      %702 = vmatprep.subr.mxu0 0.0
      %703 = vmatpush1.msra.mxu0 %v687
      %704 = vmatprep.subr.mxu0 0.0
      %705 = vmatpush1.msra.mxu0 %v688
      %706 = vmatprep.subr.mxu0 0.0
      %707 = vmatpush1.msra.mxu0 %v689
      %708 = vmatprep.subr.mxu0 0.0
      %709 = vmatpush1.msra.mxu0 %v690
      %710 = vmatprep.subr.mxu0 0.0
      %711 = vmatpush1.msra.mxu0 0.0
      %712 = vmatprep.subr.mxu0 0.0
      %713 = vmatpush1.msra.mxu0 0.0
      %714 = vmatprep.subr.mxu0 0.0
      %715 = vmatpush1.msra.mxu0 0.0
      %716 = vmatprep.subr.mxu0 0.0
      %717 = vmatpush1.msra.mxu0 0.0
      %718 = vmatprep.subr.mxu0 0.0
      %719 = vmatpush1.msra.mxu0 0.0
      %720 = vmatprep.subr.mxu0 0.0
      %721 = vmatpush1.msra.mxu0 0.0
      %722 = vmatprep.subr.mxu0 0.0
      %723 = vmatpush1.msra.mxu0 0.0
      %724 = vmatprep.subr.mxu0 0.0
      %725 = vmatpush1.msra.mxu0 0.0
      %726 = vmatprep.subr.mxu0 0.0
      %727 = vmatpush1.msra.mxu0 0.0
      %728 = vmatprep.subr.mxu0 0.0
      %729 = vmatpush1.msra.mxu0 0.0
      %730 = vmatprep.subr.mxu0 0.0
      %731 = vmatpush1.msra.mxu0 0.0
      %732 = vmatprep.subr.mxu0 0.0
      %733 = vmatpush1.msra.mxu0 0.0
      %734 = vmatprep.subr.mxu0 0.0
      %735 = vmatpush1.msra.mxu0 0.0
      %736 = vmatprep.subr.mxu0 0.0
      %737 = vmatpush1.msra.mxu0 0.0
      %738 = vmatprep.subr.mxu0 0.0
      %739 = vmatpush1.msra.mxu0 0.0
      %740 = vmatprep.subr.mxu0 0.0
      %741 = vmatpush1.msra.mxu0 0.0
      %742 = vmatprep.subr.mxu0 0.0
      %743 = vmatpush1.msra.mxu0 0.0
      %744 = vmatprep.subr.mxu0 0.0
      %745 = vmatpush1.msra.mxu0 0.0
      %746 = vmatprep.subr.mxu0 0.0
      %747 = vmatpush1.msra.mxu0 0.0
      %748 = vmatprep.subr.mxu0 0.0
      %749 = vmatpush1.msra.mxu0 0.0
      %750 = vmatprep.subr.mxu0 0.0
      %751 = vmatpush1.msra.mxu0 0.0
      %752 = vmatprep.subr.mxu0 0.0
      %753 = vmatpush1.msra.mxu0 0.0
      %754 = vmatprep.subr.mxu0 0.0
      %755 = vmatpush1.msra.mxu0 0.0
      %756 = vmatprep.subr.mxu0 0.0
      %757 = vmatpush1.msra.mxu0 0.0
      %758 = vmatprep.subr.mxu0 0.0
      %759 = vmatpush1.msra.mxu0 0.0
      %760 = vmatprep.subr.mxu0 0.0
      %761 = vmatpush1.msra.mxu0 0.0
      %762 = vmatprep.subr.mxu0 0.0
      %763 = vmatpush1.msra.mxu0 0.0
      %764 = vmatprep.subr.mxu0 0.0
      %765 = vmatpush1.msra.mxu0 0.0
      %766 = vmatprep.mubr.f32.mxu0 0.0
      %767 = vmatmul.mubr.f32.gmra.mrb[0].mxu0 %v700
      %v768 = vpop.f32.mrb[0].mxu0
      %v769 = vadd.f32 %v696, %v768
      %v770 = vpop.f32.mrb[0].mxu0
      %771 = vdwg.mxu0
      %v772 = vld [vmem:[%s677] sm:$0xff]
      %v773 = vld [vmem:[%s677 + $0x8] sm:$0xff]
      %v774 = vadd.f32 %v683, %v772
      %v775 = vadd.f32 %v684, %v773
      %v776 = vld [vmem:[%s6] sm:$0xff]
      %v777 = vld [vmem:[%s6 + $0x8] sm:$0xff]
      %v778 = vld [vmem:[%s6 + $0x10] sm:$0xff]
      %v779 = vld [vmem:[%s6 + $0x18] sm:$0xff]
      %v780 = vld [vmem:[%s7] sm:$0x1]
      %v782 = vlaneseq
      %v783 = vshrl.u32 %v782, 7
      %v784 = vsub.s32 0, %v783
      %v785 = vrot.slane %v780, %v784
      %v788 = vsel %vm698, %v774, 0
      %v791 = vsel %vm698, %v775, 0
      %793 = vmatprep.subr.mxu0 0.0
      %794 = vmatpush1.msra.mxu0 %v776
      %795 = vmatprep.subr.mxu0 0.0
      %796 = vmatpush1.msra.mxu0 %v777
      %797 = vmatprep.subr.mxu0 0.0
      %798 = vmatpush1.msra.mxu0 %v778
      %799 = vmatprep.subr.mxu0 0.0
      %800 = vmatpush1.msra.mxu0 %v779
      %801 = vmatprep.subr.mxu0 0.0
      %802 = vmatpush1.msra.mxu0 0.0
      %803 = vmatprep.subr.mxu0 0.0
      %804 = vmatpush1.msra.mxu0 0.0
      %805 = vmatprep.subr.mxu0 0.0
      %806 = vmatpush1.msra.mxu0 0.0
      %807 = vmatprep.subr.mxu0 0.0
      %808 = vmatpush1.msra.mxu0 0.0
      %809 = vmatprep.subr.mxu0 0.0
      %810 = vmatpush1.msra.mxu0 0.0
      %811 = vmatprep.subr.mxu0 0.0
      %812 = vmatpush1.msra.mxu0 0.0
      %813 = vmatprep.subr.mxu0 0.0
      %814 = vmatpush1.msra.mxu0 0.0
      %815 = vmatprep.subr.mxu0 0.0
      %816 = vmatpush1.msra.mxu0 0.0
      %817 = vmatprep.subr.mxu0 0.0
      %818 = vmatpush1.msra.mxu0 0.0
      %819 = vmatprep.subr.mxu0 0.0
      %820 = vmatpush1.msra.mxu0 0.0
      %821 = vmatprep.subr.mxu0 0.0
      %822 = vmatpush1.msra.mxu0 0.0
      %823 = vmatprep.subr.mxu0 0.0
      %824 = vmatpush1.msra.mxu0 0.0
      %825 = vmatprep.subr.mxu0 0.0
      %826 = vmatpush1.msra.mxu0 0.0
      %827 = vmatprep.subr.mxu0 0.0
      %828 = vmatpush1.msra.mxu0 0.0
      %829 = vmatprep.subr.mxu0 0.0
      %830 = vmatpush1.msra.mxu0 0.0
      %831 = vmatprep.subr.mxu0 0.0
      %832 = vmatpush1.msra.mxu0 0.0
      %833 = vmatprep.subr.mxu0 0.0
      %834 = vmatpush1.msra.mxu0 0.0
      %835 = vmatprep.subr.mxu0 0.0
      %836 = vmatpush1.msra.mxu0 0.0
      %837 = vmatprep.subr.mxu0 0.0
      %838 = vmatpush1.msra.mxu0 0.0
      %839 = vmatprep.subr.mxu0 0.0
      %840 = vmatpush1.msra.mxu0 0.0
      %841 = vmatprep.subr.mxu0 0.0
      %842 = vmatpush1.msra.mxu0 0.0
      %843 = vmatprep.subr.mxu0 0.0
      %844 = vmatpush1.msra.mxu0 0.0
      %845 = vmatprep.subr.mxu0 0.0
      %846 = vmatpush1.msra.mxu0 0.0
      %847 = vmatprep.subr.mxu0 0.0
      %848 = vmatpush1.msra.mxu0 0.0
      %849 = vmatprep.subr.mxu0 0.0
      %850 = vmatpush1.msra.mxu0 0.0
      %851 = vmatprep.subr.mxu0 0.0
      %852 = vmatpush1.msra.mxu0 0.0
      %853 = vmatprep.subr.mxu0 0.0
      %854 = vmatpush1.msra.mxu0 0.0
      %855 = vmatprep.subr.mxu0 0.0
      %856 = vmatpush1.msra.mxu0 0.0
      %857 = vmatprep.mubr.f32.mxu0 0.0
      %858 = vmatmul.mubr.f32.gmra.mrb[0].mxu0 %v788
      %v859 = vpop.f32.mrb[0].mxu0
      %v860 = vadd.f32 %v785, %v859
      %v861 = vpop.f32.mrb[0].mxu0
      %862 = vmatprep.mubr.f32.mxu0 0.0
      %863 = vmatmul.mubr.f32.gmra.mrb[0].mxu0 %v791
      %v864 = vpop.f32.mrb[0].mxu0
      %v865 = vadd.f32 %v785, %v864
      %v866 = vpop.f32.mrb[0].mxu0
      %867 = vdwg.mxu0
      %v868 = vld [vmem:[%s8] sm:$0xff]
      %v869 = vld [vmem:[%s8 + $0x8] sm:$0xff]
      %v870 = vld [vmem:[%s8 + $0x10] sm:$0xff]
      %v871 = vld [vmem:[%s8 + $0x18] sm:$0xff]
      %v872 = vld [vmem:[%s9] sm:$0x1]
      %v874 = vlaneseq
      %v875 = vshrl.u32 %v874, 7
      %v876 = vsub.s32 0, %v875
      %v877 = vrot.slane %v872, %v876
      %v880 = vsel %vm698, %v683, 0
      %v883 = vsel %vm698, %v684, 0
      %885 = vmatprep.subr.mxu0 0.0
      %886 = vmatpush1.msra.mxu0 %v868
      %887 = vmatprep.subr.mxu0 0.0
      %888 = vmatpush1.msra.mxu0 %v869
      %889 = vmatprep.subr.mxu0 0.0
      %890 = vmatpush1.msra.mxu0 %v870
      %891 = vmatprep.subr.mxu0 0.0
      %892 = vmatpush1.msra.mxu0 %v871
      %893 = vmatprep.subr.mxu0 0.0
      %894 = vmatpush1.msra.mxu0 0.0
      %895 = vmatprep.subr.mxu0 0.0
      %896 = vmatpush1.msra.mxu0 0.0
      %897 = vmatprep.subr.mxu0 0.0
      %898 = vmatpush1.msra.mxu0 0.0
      %899 = vmatprep.subr.mxu0 0.0
      %900 = vmatpush1.msra.mxu0 0.0
      %901 = vmatprep.subr.mxu0 0.0
      %902 = vmatpush1.msra.mxu0 0.0
      %903 = vmatprep.subr.mxu0 0.0
      %904 = vmatpush1.msra.mxu0 0.0
      %905 = vmatprep.subr.mxu0 0.0
      %906 = vmatpush1.msra.mxu0 0.0
      %907 = vmatprep.subr.mxu0 0.0
      %908 = vmatpush1.msra.mxu0 0.0
      %909 = vmatprep.subr.mxu0 0.0
      %910 = vmatpush1.msra.mxu0 0.0
      %911 = vmatprep.subr.mxu0 0.0
      %912 = vmatpush1.msra.mxu0 0.0
      %913 = vmatprep.subr.mxu0 0.0
      %914 = vmatpush1.msra.mxu0 0.0
      %915 = vmatprep.subr.mxu0 0.0
      %916 = vmatpush1.msra.mxu0 0.0
      %917 = vmatprep.subr.mxu0 0.0
      %918 = vmatpush1.msra.mxu0 0.0
      %919 = vmatprep.subr.mxu0 0.0
      %920 = vmatpush1.msra.mxu0 0.0
      %921 = vmatprep.subr.mxu0 0.0
      %922 = vmatpush1.msra.mxu0 0.0
      %923 = vmatprep.subr.mxu0 0.0
      %924 = vmatpush1.msra.mxu0 0.0
      %925 = vmatprep.subr.mxu0 0.0
      %926 = vmatpush1.msra.mxu0 0.0
      %927 = vmatprep.subr.mxu0 0.0
      %928 = vmatpush1.msra.mxu0 0.0
      %929 = vmatprep.subr.mxu0 0.0
      %930 = vmatpush1.msra.mxu0 0.0
      %931 = vmatprep.subr.mxu0 0.0
      %932 = vmatpush1.msra.mxu0 0.0
      %933 = vmatprep.subr.mxu0 0.0
      %934 = vmatpush1.msra.mxu0 0.0
      %935 = vmatprep.subr.mxu0 0.0
      %936 = vmatpush1.msra.mxu0 0.0
      %937 = vmatprep.subr.mxu0 0.0
      %938 = vmatpush1.msra.mxu0 0.0
      %939 = vmatprep.subr.mxu0 0.0
      %940 = vmatpush1.msra.mxu0 0.0
      %941 = vmatprep.subr.mxu0 0.0
      %942 = vmatpush1.msra.mxu0 0.0
      %943 = vmatprep.subr.mxu0 0.0
      %944 = vmatpush1.msra.mxu0 0.0
      %945 = vmatprep.subr.mxu0 0.0
      %946 = vmatpush1.msra.mxu0 0.0
      %947 = vmatprep.subr.mxu0 0.0
      %948 = vmatpush1.msra.mxu0 0.0
      %949 = vmatprep.mubr.f32.mxu0 0.0
      %950 = vmatmul.mubr.f32.gmra.mrb[0].mxu0 %v880
      %v951 = vpop.f32.mrb[0].mxu0
      %v952 = vadd.f32 %v877, %v951
      %v953 = vpop.f32.mrb[0].mxu0
      %954 = vmatprep.mubr.f32.mxu0 0.0
      %955 = vmatmul.mubr.f32.gmra.mrb[0].mxu0 %v883
      %v956 = vpop.f32.mrb[0].mxu0
      %v957 = vadd.f32 %v877, %v956
      %v958 = vpop.f32.mrb[0].mxu0
      %959 = vdwg.mxu0
      %v960 = vld [vmem:[%s10] sm:$0xff]
      %v961 = vld [vmem:[%s10 + $0x8] sm:$0xff]
      %v962 = vld [vmem:[%s10 + $0x10] sm:$0xff]
      %v963 = vld [vmem:[%s10 + $0x18] sm:$0xff]
      %vm964 = vcmask 64512
      %v966 = vsel %vm964, %v769, 0
      %v969 = vsel %vm964, %v860, 0
      %v972 = vsel %vm964, %v865, 0
      %974 = vmatprep.subr.mxu0 0.0
      %975 = vmatpush1.xpose.msra.mxu0 %v969
      %976 = vmatprep.subr.mxu0 0.0
      %977 = vmatpush1.xpose.msra.mxu0 %v972
      %978 = vmatprep.subr.mxu0 0.0
      %979 = vmatpush1.xpose.msra.mxu0 0.0
      %980 = vmatprep.subr.mxu0 0.0
      %981 = vmatpush1.xpose.msra.mxu0 0.0
      %982 = vmatprep.subr.mxu0 0.0
      %983 = vmatpush1.xpose.msra.mxu0 0.0
      %984 = vmatprep.subr.mxu0 0.0
      %985 = vmatpush1.xpose.msra.mxu0 0.0
      %986 = vmatprep.subr.mxu0 0.0
      %987 = vmatpush1.xpose.msra.mxu0 0.0
      %988 = vmatprep.subr.mxu0 0.0
      %989 = vmatpush1.xpose.msra.mxu0 0.0
      %990 = vmatprep.subr.mxu0 0.0
      %991 = vmatpush1.xpose.msra.mxu0 0.0
      %992 = vmatprep.subr.mxu0 0.0
      %993 = vmatpush1.xpose.msra.mxu0 0.0
      %994 = vmatprep.subr.mxu0 0.0
      %995 = vmatpush1.xpose.msra.mxu0 0.0
      %996 = vmatprep.subr.mxu0 0.0
      %997 = vmatpush1.xpose.msra.mxu0 0.0
      %998 = vmatprep.subr.mxu0 0.0
      %999 = vmatpush1.xpose.msra.mxu0 0.0
      %1000 = vmatprep.subr.mxu0 0.0
      %1001 = vmatpush1.xpose.msra.mxu0 0.0
      %1002 = vmatprep.subr.mxu0 0.0
      %1003 = vmatpush1.xpose.msra.mxu0 0.0
      %1004 = vmatprep.subr.mxu0 0.0
      %1005 = vmatpush1.xpose.msra.mxu0 0.0
      %1006 = vmatprep.subr.mxu0 0.0
      %1007 = vmatpush1.xpose.msra.mxu0 0.0
      %1008 = vmatprep.subr.mxu0 0.0
      %1009 = vmatpush1.xpose.msra.mxu0 0.0
      %1010 = vmatprep.subr.mxu0 0.0
      %1011 = vmatpush1.xpose.msra.mxu0 0.0
      %1012 = vmatprep.subr.mxu0 0.0
      %1013 = vmatpush1.xpose.msra.mxu0 0.0
      %1014 = vmatprep.subr.mxu0 0.0
      %1015 = vmatpush1.xpose.msra.mxu0 0.0
      %1016 = vmatprep.subr.mxu0 0.0
      %1017 = vmatpush1.xpose.msra.mxu0 0.0
      %1018 = vmatprep.subr.mxu0 0.0
      %1019 = vmatpush1.xpose.msra.mxu0 0.0
      %1020 = vmatprep.subr.mxu0 0.0
      %1021 = vmatpush1.xpose.msra.mxu0 0.0
      %1022 = vmatprep.subr.mxu0 0.0
      %1023 = vmatpush1.xpose.msra.mxu0 0.0
      %1024 = vmatprep.subr.mxu0 0.0
      %1025 = vmatpush1.xpose.msra.mxu0 0.0
      %1026 = vmatprep.subr.mxu0 0.0
      %1027 = vmatpush1.xpose.msra.mxu0 0.0
      %1028 = vmatprep.subr.mxu0 0.0
      %1029 = vmatpush1.xpose.msra.mxu0 0.0
      %1030 = vmatprep.subr.mxu0 0.0
      %1031 = vmatpush1.xpose.msra.mxu0 0.0
      %1032 = vmatprep.subr.mxu0 0.0
      %1033 = vmatpush1.xpose.msra.mxu0 0.0
      %1034 = vmatprep.subr.mxu0 0.0
      %1035 = vmatpush1.xpose.msra.mxu0 0.0
      %1036 = vmatprep.subr.mxu0 0.0
      %1037 = vmatpush1.xpose.msra.mxu0 0.0
      %1038 = vmatprep.mubr.f32.mxu0 0.0
      %1039 = vmatmul.mubr.f32.gmra.mrb[0].mxu0 %v966
      %v1040 = vpop.f32.mrb[0].mxu0
      %v1041 = vadd.f32 0.0, %v1040
      %v1042 = vpop.f32.mrb[0].mxu0
      %1043 = vdwg.mxu0
      %vm1044 = vcmask 130048
      %v1045 = vsel %vm1044, %v1041, -inf
      %1046 = vmax.xlane.f32.xlu0 %v1045
      %v1047 = vpop.xlane.xlu0 %1046
      %v1048 = vsub.f32 %v1041, %v1047
      %v1049 = vmul.f32 %v1048, 1.442695
      %v1050 = vpow.pop %v1049
      %v1051 = vsel %vm1044, %v1050, 0.0
      %1052 = vadd.xlane.f32.xlu0 %v1051
      %v1053 = vpop.xlane.xlu0 %1052
      %v1054 = vrcp.pop %v1053
      %v1055 = vmul.f32 %v1050, %v1054
      %v1057 = vsel %vm1044, %v1055, 0
      %1059 = vmatprep.subr.mxu0 0.0
      %1060 = vmatpush1.msra.mxu0 %v952
      %1061 = vmatprep.subr.mxu0 0.0
      %1062 = vmatpush1.msra.mxu0 %v957
      %1063 = vmatprep.subr.mxu0 0.0
      %1064 = vmatpush1.msra.mxu0 0.0
      %1065 = vmatprep.subr.mxu0 0.0
      %1066 = vmatpush1.msra.mxu0 0.0
      %1067 = vmatprep.subr.mxu0 0.0
      %1068 = vmatpush1.msra.mxu0 0.0
      %1069 = vmatprep.subr.mxu0 0.0
      %1070 = vmatpush1.msra.mxu0 0.0
      %1071 = vmatprep.subr.mxu0 0.0
      %1072 = vmatpush1.msra.mxu0 0.0
      %1073 = vmatprep.subr.mxu0 0.0
      %1074 = vmatpush1.msra.mxu0 0.0
      %1075 = vmatprep.subr.mxu0 0.0
      %1076 = vmatpush1.msra.mxu0 0.0
      %1077 = vmatprep.subr.mxu0 0.0
      %1078 = vmatpush1.msra.mxu0 0.0
      %1079 = vmatprep.subr.mxu0 0.0
      %1080 = vmatpush1.msra.mxu0 0.0
      %1081 = vmatprep.subr.mxu0 0.0
      %1082 = vmatpush1.msra.mxu0 0.0
      %1083 = vmatprep.subr.mxu0 0.0
      %1084 = vmatpush1.msra.mxu0 0.0
      %1085 = vmatprep.subr.mxu0 0.0
      %1086 = vmatpush1.msra.mxu0 0.0
      %1087 = vmatprep.subr.mxu0 0.0
      %1088 = vmatpush1.msra.mxu0 0.0
      %1089 = vmatprep.subr.mxu0 0.0
      %1090 = vmatpush1.msra.mxu0 0.0
      %1091 = vmatprep.subr.mxu0 0.0
      %1092 = vmatpush1.msra.mxu0 0.0
      %1093 = vmatprep.subr.mxu0 0.0
      %1094 = vmatpush1.msra.mxu0 0.0
      %1095 = vmatprep.subr.mxu0 0.0
      %1096 = vmatpush1.msra.mxu0 0.0
      %1097 = vmatprep.subr.mxu0 0.0
      %1098 = vmatpush1.msra.mxu0 0.0
      %1099 = vmatprep.subr.mxu0 0.0
      %1100 = vmatpush1.msra.mxu0 0.0
      %1101 = vmatprep.subr.mxu0 0.0
      %1102 = vmatpush1.msra.mxu0 0.0
      %1103 = vmatprep.subr.mxu0 0.0
      %1104 = vmatpush1.msra.mxu0 0.0
      %1105 = vmatprep.subr.mxu0 0.0
      %1106 = vmatpush1.msra.mxu0 0.0
      %1107 = vmatprep.subr.mxu0 0.0
      %1108 = vmatpush1.msra.mxu0 0.0
      %1109 = vmatprep.subr.mxu0 0.0
      %1110 = vmatpush1.msra.mxu0 0.0
      %1111 = vmatprep.subr.mxu0 0.0
      %1112 = vmatpush1.msra.mxu0 0.0
      %1113 = vmatprep.subr.mxu0 0.0
      %1114 = vmatpush1.msra.mxu0 0.0
      %1115 = vmatprep.subr.mxu0 0.0
      %1116 = vmatpush1.msra.mxu0 0.0
      %1117 = vmatprep.subr.mxu0 0.0
      %1118 = vmatpush1.msra.mxu0 0.0
      %1119 = vmatprep.subr.mxu0 0.0
      %1120 = vmatpush1.msra.mxu0 0.0
      %1121 = vmatprep.subr.mxu0 0.0
      %1122 = vmatpush1.msra.mxu0 0.0
      %1123 = vmatprep.mubr.f32.mxu0 0.0
      %1124 = vmatmul.mubr.f32.gmra.mrb[0].mxu0 %v1057
      %v1125 = vpop.f32.mrb[0].mxu0
      %v1126 = vadd.f32 0.0, %v1125
      %v1127 = vpop.f32.mrb[0].mxu0
      %1128 = vdwg.mxu0
      %1129 = vrot.lane.b32.xlu0 %v769, 120
      %v1130 = vpop.permute.xlu0 %1129
      %1131 = vrot.lane.b32.xlu0 %v860, 120
      %v1132 = vpop.permute.xlu0 %1131
      %1133 = vrot.lane.b32.xlu0 %v865, 120
      %v1134 = vpop.permute.xlu0 %1133
      %v1135 = vsel %vm964, %v1130, 0
      %v1137 = vsel %vm964, %v1132, 0
      %v1139 = vsel %vm964, %v1134, 0
      %1141 = vmatprep.subr.mxu0 0.0
      %1142 = vmatpush1.xpose.msra.mxu0 %v1137
      %1143 = vmatprep.subr.mxu0 0.0
      %1144 = vmatpush1.xpose.msra.mxu0 %v1139
      %1145 = vmatprep.subr.mxu0 0.0
      %1146 = vmatpush1.xpose.msra.mxu0 0.0
      %1147 = vmatprep.subr.mxu0 0.0
      %1148 = vmatpush1.xpose.msra.mxu0 0.0
      %1149 = vmatprep.subr.mxu0 0.0
      %1150 = vmatpush1.xpose.msra.mxu0 0.0
      %1151 = vmatprep.subr.mxu0 0.0
      %1152 = vmatpush1.xpose.msra.mxu0 0.0
      %1153 = vmatprep.subr.mxu0 0.0
      %1154 = vmatpush1.xpose.msra.mxu0 0.0
      %1155 = vmatprep.subr.mxu0 0.0
      %1156 = vmatpush1.xpose.msra.mxu0 0.0
      %1157 = vmatprep.subr.mxu0 0.0
      %1158 = vmatpush1.xpose.msra.mxu0 0.0
      %1159 = vmatprep.subr.mxu0 0.0
      %1160 = vmatpush1.xpose.msra.mxu0 0.0
      %1161 = vmatprep.subr.mxu0 0.0
      %1162 = vmatpush1.xpose.msra.mxu0 0.0
      %1163 = vmatprep.subr.mxu0 0.0
      %1164 = vmatpush1.xpose.msra.mxu0 0.0
      %1165 = vmatprep.subr.mxu0 0.0
      %1166 = vmatpush1.xpose.msra.mxu0 0.0
      %1167 = vmatprep.subr.mxu0 0.0
      %1168 = vmatpush1.xpose.msra.mxu0 0.0
      %1169 = vmatprep.subr.mxu0 0.0
      %1170 = vmatpush1.xpose.msra.mxu0 0.0
      %1171 = vmatprep.subr.mxu0 0.0
      %1172 = vmatpush1.xpose.msra.mxu0 0.0
      %1173 = vmatprep.subr.mxu0 0.0
      %1174 = vmatpush1.xpose.msra.mxu0 0.0
      %1175 = vmatprep.subr.mxu0 0.0
      %1176 = vmatpush1.xpose.msra.mxu0 0.0
      %1177 = vmatprep.subr.mxu0 0.0
      %1178 = vmatpush1.xpose.msra.mxu0 0.0
      %1179 = vmatprep.subr.mxu0 0.0
      %1180 = vmatpush1.xpose.msra.mxu0 0.0
      %1181 = vmatprep.subr.mxu0 0.0
      %1182 = vmatpush1.xpose.msra.mxu0 0.0
      %1183 = vmatprep.subr.mxu0 0.0
      %1184 = vmatpush1.xpose.msra.mxu0 0.0
      %1185 = vmatprep.subr.mxu0 0.0
      %1186 = vmatpush1.xpose.msra.mxu0 0.0
      %1187 = vmatprep.subr.mxu0 0.0
      %1188 = vmatpush1.xpose.msra.mxu0 0.0
      %1189 = vmatprep.subr.mxu0 0.0
      %1190 = vmatpush1.xpose.msra.mxu0 0.0
      %1191 = vmatprep.subr.mxu0 0.0
      %1192 = vmatpush1.xpose.msra.mxu0 0.0
      %1193 = vmatprep.subr.mxu0 0.0
      %1194 = vmatpush1.xpose.msra.mxu0 0.0
      %1195 = vmatprep.subr.mxu0 0.0
      %1196 = vmatpush1.xpose.msra.mxu0 0.0
      %1197 = vmatprep.subr.mxu0 0.0
      %1198 = vmatpush1.xpose.msra.mxu0 0.0
      %1199 = vmatprep.subr.mxu0 0.0
      %1200 = vmatpush1.xpose.msra.mxu0 0.0
      %1201 = vmatprep.subr.mxu0 0.0
      %1202 = vmatpush1.xpose.msra.mxu0 0.0
      %1203 = vmatprep.subr.mxu0 0.0
      %1204 = vmatpush1.xpose.msra.mxu0 0.0
      %1205 = vmatprep.mubr.f32.mxu0 0.0
      %1206 = vmatmul.mubr.f32.gmra.mrb[0].mxu0 %v1135
      %v1207 = vpop.f32.mrb[0].mxu0
      %v1208 = vadd.f32 0.0, %v1207
      %v1209 = vpop.f32.mrb[0].mxu0
      %1210 = vdwg.mxu0
      %v1211 = vsel %vm1044, %v1208, -inf
      %1212 = vmax.xlane.f32.xlu0 %v1211
      %v1213 = vpop.xlane.xlu0 %1212
      %v1214 = vsub.f32 %v1208, %v1213
      %v1215 = vmul.f32 %v1214, 1.442695
      %v1216 = vpow.pop %v1215
      %v1217 = vsel %vm1044, %v1216, 0.0
      %1218 = vadd.xlane.f32.xlu0 %v1217
      %v1219 = vpop.xlane.xlu0 %1218
      %v1220 = vrcp.pop %v1219
      %v1221 = vmul.f32 %v1216, %v1220
      %1224 = vrot.lane.b32.xlu0 %v952, 120
      %v1225 = vpop.permute.xlu0 %1224
      %1226 = vrot.lane.b32.xlu0 %v957, 120
      %v1227 = vpop.permute.xlu0 %1226
      %v1231 = vsel %vm1044, %v1221, 0
      %1233 = vmatprep.subr.mxu0 0.0
      %1234 = vmatpush1.msra.mxu0 %v1225
      %1235 = vmatprep.subr.mxu0 0.0
      %1236 = vmatpush1.msra.mxu0 %v1227
      %1237 = vmatprep.subr.mxu0 0.0
      %1238 = vmatpush1.msra.mxu0 0.0
      %1239 = vmatprep.subr.mxu0 0.0
      %1240 = vmatpush1.msra.mxu0 0.0
      %1241 = vmatprep.subr.mxu0 0.0
      %1242 = vmatpush1.msra.mxu0 0.0
      %1243 = vmatprep.subr.mxu0 0.0
      %1244 = vmatpush1.msra.mxu0 0.0
      %1245 = vmatprep.subr.mxu0 0.0
      %1246 = vmatpush1.msra.mxu0 0.0
      %1247 = vmatprep.subr.mxu0 0.0
      %1248 = vmatpush1.msra.mxu0 0.0
      %1249 = vmatprep.subr.mxu0 0.0
      %1250 = vmatpush1.msra.mxu0 0.0
      %1251 = vmatprep.subr.mxu0 0.0
      %1252 = vmatpush1.msra.mxu0 0.0
      %1253 = vmatprep.subr.mxu0 0.0
      %1254 = vmatpush1.msra.mxu0 0.0
      %1255 = vmatprep.subr.mxu0 0.0
      %1256 = vmatpush1.msra.mxu0 0.0
      %1257 = vmatprep.subr.mxu0 0.0
      %1258 = vmatpush1.msra.mxu0 0.0
      %1259 = vmatprep.subr.mxu0 0.0
      %1260 = vmatpush1.msra.mxu0 0.0
      %1261 = vmatprep.subr.mxu0 0.0
      %1262 = vmatpush1.msra.mxu0 0.0
      %1263 = vmatprep.subr.mxu0 0.0
      %1264 = vmatpush1.msra.mxu0 0.0
      %1265 = vmatprep.subr.mxu0 0.0
      %1266 = vmatpush1.msra.mxu0 0.0
      %1267 = vmatprep.subr.mxu0 0.0
      %1268 = vmatpush1.msra.mxu0 0.0
      %1269 = vmatprep.subr.mxu0 0.0
      %1270 = vmatpush1.msra.mxu0 0.0
      %1271 = vmatprep.subr.mxu0 0.0
      %1272 = vmatpush1.msra.mxu0 0.0
      %1273 = vmatprep.subr.mxu0 0.0
      %1274 = vmatpush1.msra.mxu0 0.0
      %1275 = vmatprep.subr.mxu0 0.0
      %1276 = vmatpush1.msra.mxu0 0.0
      %1277 = vmatprep.subr.mxu0 0.0
      %1278 = vmatpush1.msra.mxu0 0.0
      %1279 = vmatprep.subr.mxu0 0.0
      %1280 = vmatpush1.msra.mxu0 0.0
      %1281 = vmatprep.subr.mxu0 0.0
      %1282 = vmatpush1.msra.mxu0 0.0
      %1283 = vmatprep.subr.mxu0 0.0
      %1284 = vmatpush1.msra.mxu0 0.0
      %1285 = vmatprep.subr.mxu0 0.0
      %1286 = vmatpush1.msra.mxu0 0.0
      %1287 = vmatprep.subr.mxu0 0.0
      %1288 = vmatpush1.msra.mxu0 0.0
      %1289 = vmatprep.subr.mxu0 0.0
      %1290 = vmatpush1.msra.mxu0 0.0
      %1291 = vmatprep.subr.mxu0 0.0
      %1292 = vmatpush1.msra.mxu0 0.0
      %1293 = vmatprep.subr.mxu0 0.0
      %1294 = vmatpush1.msra.mxu0 0.0
      %1295 = vmatprep.subr.mxu0 0.0
      %1296 = vmatpush1.msra.mxu0 0.0
      %1297 = vmatprep.mubr.f32.mxu0 0.0
      %1298 = vmatmul.mubr.f32.gmra.mrb[0].mxu0 %v1231
      %v1299 = vpop.f32.mrb[0].mxu0
      %v1300 = vadd.f32 0.0, %v1299
      %v1301 = vpop.f32.mrb[0].mxu0
      %1302 = vdwg.mxu0
      %v1304 = vsel %vm964, %v1300, 0
      %1306 = vmatprep.subr.mxu0 0.0
      %1307 = vmatpush1.msra.mxu0 %v961
      %1308 = vmatprep.subr.mxu0 0.0
      %1309 = vmatpush1.msra.mxu0 0.0
      %1310 = vmatprep.subr.mxu0 0.0
      %1311 = vmatpush1.msra.mxu0 0.0
      %1312 = vmatprep.subr.mxu0 0.0
      %1313 = vmatpush1.msra.mxu0 0.0
      %1314 = vmatprep.subr.mxu0 0.0
      %1315 = vmatpush1.msra.mxu0 0.0
      %1316 = vmatprep.subr.mxu0 0.0
      %1317 = vmatpush1.msra.mxu0 0.0
      %1318 = vmatprep.subr.mxu0 0.0
      %1319 = vmatpush1.msra.mxu0 0.0
      %1320 = vmatprep.subr.mxu0 0.0
      %1321 = vmatpush1.msra.mxu0 0.0
      %1322 = vmatprep.subr.mxu0 0.0
      %1323 = vmatpush1.msra.mxu0 0.0
      %1324 = vmatprep.subr.mxu0 0.0
      %1325 = vmatpush1.msra.mxu0 0.0
      %1326 = vmatprep.subr.mxu0 0.0
      %1327 = vmatpush1.msra.mxu0 0.0
      %1328 = vmatprep.subr.mxu0 0.0
      %1329 = vmatpush1.msra.mxu0 0.0
      %1330 = vmatprep.subr.mxu0 0.0
      %1331 = vmatpush1.msra.mxu0 0.0
      %1332 = vmatprep.subr.mxu0 0.0
      %1333 = vmatpush1.msra.mxu0 0.0
      %1334 = vmatprep.subr.mxu0 0.0
      %1335 = vmatpush1.msra.mxu0 0.0
      %1336 = vmatprep.subr.mxu0 0.0
      %1337 = vmatpush1.msra.mxu0 0.0
      %1338 = vmatprep.subr.mxu0 0.0
      %1339 = vmatpush1.msra.mxu0 0.0
      %1340 = vmatprep.subr.mxu0 0.0
      %1341 = vmatpush1.msra.mxu0 0.0
      %1342 = vmatprep.subr.mxu0 0.0
      %1343 = vmatpush1.msra.mxu0 0.0
      %1344 = vmatprep.subr.mxu0 0.0
      %1345 = vmatpush1.msra.mxu0 0.0
      %1346 = vmatprep.subr.mxu0 0.0
      %1347 = vmatpush1.msra.mxu0 0.0
      %1348 = vmatprep.subr.mxu0 0.0
      %1349 = vmatpush1.msra.mxu0 0.0
      %1350 = vmatprep.subr.mxu0 0.0
      %1351 = vmatpush1.msra.mxu0 0.0
      %1352 = vmatprep.subr.mxu0 0.0
      %1353 = vmatpush1.msra.mxu0 0.0
      %1354 = vmatprep.subr.mxu0 0.0
      %1355 = vmatpush1.msra.mxu0 0.0
      %1356 = vmatprep.subr.mxu0 0.0
      %1357 = vmatpush1.msra.mxu0 0.0
      %1358 = vmatprep.subr.mxu0 0.0
      %1359 = vmatpush1.msra.mxu0 0.0
      %1360 = vmatprep.subr.mxu0 0.0
      %1361 = vmatpush1.msra.mxu0 0.0
      %1362 = vmatprep.subr.mxu0 0.0
      %1363 = vmatpush1.msra.mxu0 0.0
      %1364 = vmatprep.subr.mxu0 0.0
      %1365 = vmatpush1.msra.mxu0 0.0
      %1366 = vmatprep.subr.mxu0 0.0
      %1367 = vmatpush1.msra.mxu0 0.0
      %1368 = vmatprep.subr.mxu0 0.0
      %1369 = vmatpush1.msra.mxu0 0.0
      %1370 = vmatprep.mubr.f32.mxu0 0.0
      %1371 = vmatmul.mubr.f32.gmra.mrb[0].mxu0 %v1304
      %v1372 = vpop.f32.mrb[0].mxu0
      %v1373 = vadd.f32 0.0, %v1372
      %v1374 = vpop.f32.mrb[0].mxu0
      %1375 = vdwg.mxu0
      %v1377 = vsel %vm964, %v1126, 0
      %1379 = vmatprep.subr.mxu0 0.0
      %1380 = vmatpush1.msra.mxu0 %v960
      %1381 = vmatprep.subr.mxu0 0.0
      %1382 = vmatpush1.msra.mxu0 0.0
      %1383 = vmatprep.subr.mxu0 0.0
      %1384 = vmatpush1.msra.mxu0 0.0
      %1385 = vmatprep.subr.mxu0 0.0
      %1386 = vmatpush1.msra.mxu0 0.0
      %1387 = vmatprep.subr.mxu0 0.0
      %1388 = vmatpush1.msra.mxu0 0.0
      %1389 = vmatprep.subr.mxu0 0.0
      %1390 = vmatpush1.msra.mxu0 0.0
      %1391 = vmatprep.subr.mxu0 0.0
      %1392 = vmatpush1.msra.mxu0 0.0
      %1393 = vmatprep.subr.mxu0 0.0
      %1394 = vmatpush1.msra.mxu0 0.0
      %1395 = vmatprep.subr.mxu0 0.0
      %1396 = vmatpush1.msra.mxu0 0.0
      %1397 = vmatprep.subr.mxu0 0.0
      %1398 = vmatpush1.msra.mxu0 0.0
      %1399 = vmatprep.subr.mxu0 0.0
      %1400 = vmatpush1.msra.mxu0 0.0
      %1401 = vmatprep.subr.mxu0 0.0
      %1402 = vmatpush1.msra.mxu0 0.0
      %1403 = vmatprep.subr.mxu0 0.0
      %1404 = vmatpush1.msra.mxu0 0.0
      %1405 = vmatprep.subr.mxu0 0.0
      %1406 = vmatpush1.msra.mxu0 0.0
      %1407 = vmatprep.subr.mxu0 0.0
      %1408 = vmatpush1.msra.mxu0 0.0
      %1409 = vmatprep.subr.mxu0 0.0
      %1410 = vmatpush1.msra.mxu0 0.0
      %1411 = vmatprep.subr.mxu0 0.0
      %1412 = vmatpush1.msra.mxu0 0.0
      %1413 = vmatprep.subr.mxu0 0.0
      %1414 = vmatpush1.msra.mxu0 0.0
      %1415 = vmatprep.subr.mxu0 0.0
      %1416 = vmatpush1.msra.mxu0 0.0
      %1417 = vmatprep.subr.mxu0 0.0
      %1418 = vmatpush1.msra.mxu0 0.0
      %1419 = vmatprep.subr.mxu0 0.0
      %1420 = vmatpush1.msra.mxu0 0.0
      %1421 = vmatprep.subr.mxu0 0.0
      %1422 = vmatpush1.msra.mxu0 0.0
      %1423 = vmatprep.subr.mxu0 0.0
      %1424 = vmatpush1.msra.mxu0 0.0
      %1425 = vmatprep.subr.mxu0 0.0
      %1426 = vmatpush1.msra.mxu0 0.0
      %1427 = vmatprep.subr.mxu0 0.0
      %1428 = vmatpush1.msra.mxu0 0.0
      %1429 = vmatprep.subr.mxu0 0.0
      %1430 = vmatpush1.msra.mxu0 0.0
      %1431 = vmatprep.subr.mxu0 0.0
      %1432 = vmatpush1.msra.mxu0 0.0
      %1433 = vmatprep.subr.mxu0 0.0
      %1434 = vmatpush1.msra.mxu0 0.0
      %1435 = vmatprep.subr.mxu0 0.0
      %1436 = vmatpush1.msra.mxu0 0.0
      %1437 = vmatprep.subr.mxu0 0.0
      %1438 = vmatpush1.msra.mxu0 0.0
      %1439 = vmatprep.subr.mxu0 0.0
      %1440 = vmatpush1.msra.mxu0 0.0
      %1441 = vmatprep.subr.mxu0 0.0
      %1442 = vmatpush1.msra.mxu0 0.0
      %1443 = vmatprep.mubr.f32.mxu0 0.0
      %1444 = vmatmul.mubr.f32.gmra.mrb[0].mxu0 %v1377
      %v1445 = vpop.f32.mrb[0].mxu0
      %v1446 = vadd.f32 %v1373, %v1445
      %v1447 = vpop.f32.mrb[0].mxu0
      %1448 = vdwg.mxu0
      %1449 = vrot.lane.b32.xlu0 %v769, 112
      %v1450 = vpop.permute.xlu0 %1449
      %1451 = vrot.lane.b32.xlu0 %v860, 112
      %v1452 = vpop.permute.xlu0 %1451
      %1453 = vrot.lane.b32.xlu0 %v865, 112
      %v1454 = vpop.permute.xlu0 %1453
      %v1455 = vsel %vm964, %v1450, 0
      %v1457 = vsel %vm964, %v1452, 0
      %v1459 = vsel %vm964, %v1454, 0
      %1461 = vmatprep.subr.mxu0 0.0
      %1462 = vmatpush1.xpose.msra.mxu0 %v1457
      %1463 = vmatprep.subr.mxu0 0.0
      %1464 = vmatpush1.xpose.msra.mxu0 %v1459
      %1465 = vmatprep.subr.mxu0 0.0
      %1466 = vmatpush1.xpose.msra.mxu0 0.0
      %1467 = vmatprep.subr.mxu0 0.0
      %1468 = vmatpush1.xpose.msra.mxu0 0.0
      %1469 = vmatprep.subr.mxu0 0.0
      %1470 = vmatpush1.xpose.msra.mxu0 0.0
      %1471 = vmatprep.subr.mxu0 0.0
      %1472 = vmatpush1.xpose.msra.mxu0 0.0
      %1473 = vmatprep.subr.mxu0 0.0
      %1474 = vmatpush1.xpose.msra.mxu0 0.0
      %1475 = vmatprep.subr.mxu0 0.0
      %1476 = vmatpush1.xpose.msra.mxu0 0.0
      %1477 = vmatprep.subr.mxu0 0.0
      %1478 = vmatpush1.xpose.msra.mxu0 0.0
      %1479 = vmatprep.subr.mxu0 0.0
      %1480 = vmatpush1.xpose.msra.mxu0 0.0
      %1481 = vmatprep.subr.mxu0 0.0
      %1482 = vmatpush1.xpose.msra.mxu0 0.0
      %1483 = vmatprep.subr.mxu0 0.0
      %1484 = vmatpush1.xpose.msra.mxu0 0.0
      %1485 = vmatprep.subr.mxu0 0.0
      %1486 = vmatpush1.xpose.msra.mxu0 0.0
      %1487 = vmatprep.subr.mxu0 0.0
      %1488 = vmatpush1.xpose.msra.mxu0 0.0
      %1489 = vmatprep.subr.mxu0 0.0
      %1490 = vmatpush1.xpose.msra.mxu0 0.0
      %1491 = vmatprep.subr.mxu0 0.0
      %1492 = vmatpush1.xpose.msra.mxu0 0.0
      %1493 = vmatprep.subr.mxu0 0.0
      %1494 = vmatpush1.xpose.msra.mxu0 0.0
      %1495 = vmatprep.subr.mxu0 0.0
      %1496 = vmatpush1.xpose.msra.mxu0 0.0
      %1497 = vmatprep.subr.mxu0 0.0
      %1498 = vmatpush1.xpose.msra.mxu0 0.0
      %1499 = vmatprep.subr.mxu0 0.0
      %1500 = vmatpush1.xpose.msra.mxu0 0.0
      %1501 = vmatprep.subr.mxu0 0.0
      %1502 = vmatpush1.xpose.msra.mxu0 0.0
      %1503 = vmatprep.subr.mxu0 0.0
      %1504 = vmatpush1.xpose.msra.mxu0 0.0
      %1505 = vmatprep.subr.mxu0 0.0
      %1506 = vmatpush1.xpose.msra.mxu0 0.0
      %1507 = vmatprep.subr.mxu0 0.0
      %1508 = vmatpush1.xpose.msra.mxu0 0.0
      %1509 = vmatprep.subr.mxu0 0.0
      %1510 = vmatpush1.xpose.msra.mxu0 0.0
      %1511 = vmatprep.subr.mxu0 0.0
      %1512 = vmatpush1.xpose.msra.mxu0 0.0
      %1513 = vmatprep.subr.mxu0 0.0
      %1514 = vmatpush1.xpose.msra.mxu0 0.0
      %1515 = vmatprep.subr.mxu0 0.0
      %1516 = vmatpush1.xpose.msra.mxu0 0.0
      %1517 = vmatprep.subr.mxu0 0.0
      %1518 = vmatpush1.xpose.msra.mxu0 0.0
      %1519 = vmatprep.subr.mxu0 0.0
      %1520 = vmatpush1.xpose.msra.mxu0 0.0
      %1521 = vmatprep.subr.mxu0 0.0
      %1522 = vmatpush1.xpose.msra.mxu0 0.0
      %1523 = vmatprep.subr.mxu0 0.0
      %1524 = vmatpush1.xpose.msra.mxu0 0.0
      %1525 = vmatprep.mubr.f32.mxu0 0.0
      %1526 = vmatmul.mubr.f32.gmra.mrb[0].mxu0 %v1455
      %v1527 = vpop.f32.mrb[0].mxu0
      %v1528 = vadd.f32 0.0, %v1527
      %v1529 = vpop.f32.mrb[0].mxu0
      %1530 = vdwg.mxu0
      %v1531 = vsel %vm1044, %v1528, -inf
      %1532 = vmax.xlane.f32.xlu0 %v1531
      %v1533 = vpop.xlane.xlu0 %1532
      %v1534 = vsub.f32 %v1528, %v1533
      %v1535 = vmul.f32 %v1534, 1.442695
      %v1536 = vpow.pop %v1535
      %v1537 = vsel %vm1044, %v1536, 0.0
      %1538 = vadd.xlane.f32.xlu0 %v1537
      %v1539 = vpop.xlane.xlu0 %1538
      %v1540 = vrcp.pop %v1539
      %v1541 = vmul.f32 %v1536, %v1540
      %1542 = vrot.lane.b32.xlu0 %v952, 112
      %v1543 = vpop.permute.xlu0 %1542
      %1544 = vrot.lane.b32.xlu0 %v957, 112
      %v1545 = vpop.permute.xlu0 %1544
      %v1549 = vsel %vm1044, %v1541, 0
      %1551 = vmatprep.subr.mxu0 0.0
      %1552 = vmatpush1.msra.mxu0 %v1543
      %1553 = vmatprep.subr.mxu0 0.0
      %1554 = vmatpush1.msra.mxu0 %v1545
      %1555 = vmatprep.subr.mxu0 0.0
      %1556 = vmatpush1.msra.mxu0 0.0
      %1557 = vmatprep.subr.mxu0 0.0
      %1558 = vmatpush1.msra.mxu0 0.0
      %1559 = vmatprep.subr.mxu0 0.0
      %1560 = vmatpush1.msra.mxu0 0.0
      %1561 = vmatprep.subr.mxu0 0.0
      %1562 = vmatpush1.msra.mxu0 0.0
      %1563 = vmatprep.subr.mxu0 0.0
      %1564 = vmatpush1.msra.mxu0 0.0
      %1565 = vmatprep.subr.mxu0 0.0
      %1566 = vmatpush1.msra.mxu0 0.0
      %1567 = vmatprep.subr.mxu0 0.0
      %1568 = vmatpush1.msra.mxu0 0.0
      %1569 = vmatprep.subr.mxu0 0.0
      %1570 = vmatpush1.msra.mxu0 0.0
      %1571 = vmatprep.subr.mxu0 0.0
      %1572 = vmatpush1.msra.mxu0 0.0
      %1573 = vmatprep.subr.mxu0 0.0
      %1574 = vmatpush1.msra.mxu0 0.0
      %1575 = vmatprep.subr.mxu0 0.0
      %1576 = vmatpush1.msra.mxu0 0.0
      %1577 = vmatprep.subr.mxu0 0.0
      %1578 = vmatpush1.msra.mxu0 0.0
      %1579 = vmatprep.subr.mxu0 0.0
      %1580 = vmatpush1.msra.mxu0 0.0
      %1581 = vmatprep.subr.mxu0 0.0
      %1582 = vmatpush1.msra.mxu0 0.0
      %1583 = vmatprep.subr.mxu0 0.0
      %1584 = vmatpush1.msra.mxu0 0.0
      %1585 = vmatprep.subr.mxu0 0.0
      %1586 = vmatpush1.msra.mxu0 0.0
      %1587 = vmatprep.subr.mxu0 0.0
      %1588 = vmatpush1.msra.mxu0 0.0
      %1589 = vmatprep.subr.mxu0 0.0
      %1590 = vmatpush1.msra.mxu0 0.0
      %1591 = vmatprep.subr.mxu0 0.0
      %1592 = vmatpush1.msra.mxu0 0.0
      %1593 = vmatprep.subr.mxu0 0.0
      %1594 = vmatpush1.msra.mxu0 0.0
      %1595 = vmatprep.subr.mxu0 0.0
      %1596 = vmatpush1.msra.mxu0 0.0
      %1597 = vmatprep.subr.mxu0 0.0
      %1598 = vmatpush1.msra.mxu0 0.0
      %1599 = vmatprep.subr.mxu0 0.0
      %1600 = vmatpush1.msra.mxu0 0.0
      %1601 = vmatprep.subr.mxu0 0.0
      %1602 = vmatpush1.msra.mxu0 0.0
      %1603 = vmatprep.subr.mxu0 0.0
      %1604 = vmatpush1.msra.mxu0 0.0
      %1605 = vmatprep.subr.mxu0 0.0
      %1606 = vmatpush1.msra.mxu0 0.0
      %1607 = vmatprep.subr.mxu0 0.0
      %1608 = vmatpush1.msra.mxu0 0.0
      %1609 = vmatprep.subr.mxu0 0.0
      %1610 = vmatpush1.msra.mxu0 0.0
      %1611 = vmatprep.subr.mxu0 0.0
      %1612 = vmatpush1.msra.mxu0 0.0
      %1613 = vmatprep.subr.mxu0 0.0
      %1614 = vmatpush1.msra.mxu0 0.0
      %1615 = vmatprep.mubr.f32.mxu0 0.0
      %1616 = vmatmul.mubr.f32.gmra.mrb[0].mxu0 %v1549
      %v1617 = vpop.f32.mrb[0].mxu0
      %v1618 = vadd.f32 0.0, %v1617
      %v1619 = vpop.f32.mrb[0].mxu0
      %1620 = vdwg.mxu0
      %v1622 = vsel %vm964, %v1618, 0
      %1624 = vmatprep.subr.mxu0 0.0
      %1625 = vmatpush1.msra.mxu0 %v962
      %1626 = vmatprep.subr.mxu0 0.0
      %1627 = vmatpush1.msra.mxu0 0.0
      %1628 = vmatprep.subr.mxu0 0.0
      %1629 = vmatpush1.msra.mxu0 0.0
      %1630 = vmatprep.subr.mxu0 0.0
      %1631 = vmatpush1.msra.mxu0 0.0
      %1632 = vmatprep.subr.mxu0 0.0
      %1633 = vmatpush1.msra.mxu0 0.0
      %1634 = vmatprep.subr.mxu0 0.0
      %1635 = vmatpush1.msra.mxu0 0.0
      %1636 = vmatprep.subr.mxu0 0.0
      %1637 = vmatpush1.msra.mxu0 0.0
      %1638 = vmatprep.subr.mxu0 0.0
      %1639 = vmatpush1.msra.mxu0 0.0
      %1640 = vmatprep.subr.mxu0 0.0
      %1641 = vmatpush1.msra.mxu0 0.0
      %1642 = vmatprep.subr.mxu0 0.0
      %1643 = vmatpush1.msra.mxu0 0.0
      %1644 = vmatprep.subr.mxu0 0.0
      %1645 = vmatpush1.msra.mxu0 0.0
      %1646 = vmatprep.subr.mxu0 0.0
      %1647 = vmatpush1.msra.mxu0 0.0
      %1648 = vmatprep.subr.mxu0 0.0
      %1649 = vmatpush1.msra.mxu0 0.0
      %1650 = vmatprep.subr.mxu0 0.0
      %1651 = vmatpush1.msra.mxu0 0.0
      %1652 = vmatprep.subr.mxu0 0.0
      %1653 = vmatpush1.msra.mxu0 0.0
      %1654 = vmatprep.subr.mxu0 0.0
      %1655 = vmatpush1.msra.mxu0 0.0
      %1656 = vmatprep.subr.mxu0 0.0
      %1657 = vmatpush1.msra.mxu0 0.0
      %1658 = vmatprep.subr.mxu0 0.0
      %1659 = vmatpush1.msra.mxu0 0.0
      %1660 = vmatprep.subr.mxu0 0.0
      %1661 = vmatpush1.msra.mxu0 0.0
      %1662 = vmatprep.subr.mxu0 0.0
      %1663 = vmatpush1.msra.mxu0 0.0
      %1664 = vmatprep.subr.mxu0 0.0
      %1665 = vmatpush1.msra.mxu0 0.0
      %1666 = vmatprep.subr.mxu0 0.0
      %1667 = vmatpush1.msra.mxu0 0.0
      %1668 = vmatprep.subr.mxu0 0.0
      %1669 = vmatpush1.msra.mxu0 0.0
      %1670 = vmatprep.subr.mxu0 0.0
      %1671 = vmatpush1.msra.mxu0 0.0
      %1672 = vmatprep.subr.mxu0 0.0
      %1673 = vmatpush1.msra.mxu0 0.0
      %1674 = vmatprep.subr.mxu0 0.0
      %1675 = vmatpush1.msra.mxu0 0.0
      %1676 = vmatprep.subr.mxu0 0.0
      %1677 = vmatpush1.msra.mxu0 0.0
      %1678 = vmatprep.subr.mxu0 0.0
      %1679 = vmatpush1.msra.mxu0 0.0
      %1680 = vmatprep.subr.mxu0 0.0
      %1681 = vmatpush1.msra.mxu0 0.0
      %1682 = vmatprep.subr.mxu0 0.0
      %1683 = vmatpush1.msra.mxu0 0.0
      %1684 = vmatprep.subr.mxu0 0.0
      %1685 = vmatpush1.msra.mxu0 0.0
      %1686 = vmatprep.subr.mxu0 0.0
      %1687 = vmatpush1.msra.mxu0 0.0
      %1688 = vmatprep.mubr.f32.mxu0 0.0
      %1689 = vmatmul.mubr.f32.gmra.mrb[0].mxu0 %v1622
      %v1690 = vpop.f32.mrb[0].mxu0
      %v1691 = vadd.f32 0.0, %v1690
      %v1692 = vpop.f32.mrb[0].mxu0
      %1693 = vdwg.mxu0
      %v1694 = vadd.f32 %v1446, %v1691
      %1695 = vrot.lane.b32.xlu0 %v769, 104
      %v1696 = vpop.permute.xlu0 %1695
      %1697 = vrot.lane.b32.xlu0 %v860, 104
      %v1698 = vpop.permute.xlu0 %1697
      %1699 = vrot.lane.b32.xlu0 %v865, 104
      %v1700 = vpop.permute.xlu0 %1699
      %v1701 = vsel %vm964, %v1696, 0
      %v1703 = vsel %vm964, %v1698, 0
      %v1705 = vsel %vm964, %v1700, 0
      %1707 = vmatprep.subr.mxu0 0.0
      %1708 = vmatpush1.xpose.msra.mxu0 %v1703
      %1709 = vmatprep.subr.mxu0 0.0
      %1710 = vmatpush1.xpose.msra.mxu0 %v1705
      %1711 = vmatprep.subr.mxu0 0.0
      %1712 = vmatpush1.xpose.msra.mxu0 0.0
      %1713 = vmatprep.subr.mxu0 0.0
      %1714 = vmatpush1.xpose.msra.mxu0 0.0
      %1715 = vmatprep.subr.mxu0 0.0
      %1716 = vmatpush1.xpose.msra.mxu0 0.0
      %1717 = vmatprep.subr.mxu0 0.0
      %1718 = vmatpush1.xpose.msra.mxu0 0.0
      %1719 = vmatprep.subr.mxu0 0.0
      %1720 = vmatpush1.xpose.msra.mxu0 0.0
      %1721 = vmatprep.subr.mxu0 0.0
      %1722 = vmatpush1.xpose.msra.mxu0 0.0
      %1723 = vmatprep.subr.mxu0 0.0
      %1724 = vmatpush1.xpose.msra.mxu0 0.0
      %1725 = vmatprep.subr.mxu0 0.0
      %1726 = vmatpush1.xpose.msra.mxu0 0.0
      %1727 = vmatprep.subr.mxu0 0.0
      %1728 = vmatpush1.xpose.msra.mxu0 0.0
      %1729 = vmatprep.subr.mxu0 0.0
      %1730 = vmatpush1.xpose.msra.mxu0 0.0
      %1731 = vmatprep.subr.mxu0 0.0
      %1732 = vmatpush1.xpose.msra.mxu0 0.0
      %1733 = vmatprep.subr.mxu0 0.0
      %1734 = vmatpush1.xpose.msra.mxu0 0.0
      %1735 = vmatprep.subr.mxu0 0.0
      %1736 = vmatpush1.xpose.msra.mxu0 0.0
      %1737 = vmatprep.subr.mxu0 0.0
      %1738 = vmatpush1.xpose.msra.mxu0 0.0
      %1739 = vmatprep.subr.mxu0 0.0
      %1740 = vmatpush1.xpose.msra.mxu0 0.0
      %1741 = vmatprep.subr.mxu0 0.0
      %1742 = vmatpush1.xpose.msra.mxu0 0.0
      %1743 = vmatprep.subr.mxu0 0.0
      %1744 = vmatpush1.xpose.msra.mxu0 0.0
      %1745 = vmatprep.subr.mxu0 0.0
      %1746 = vmatpush1.xpose.msra.mxu0 0.0
      %1747 = vmatprep.subr.mxu0 0.0
      %1748 = vmatpush1.xpose.msra.mxu0 0.0
      %1749 = vmatprep.subr.mxu0 0.0
      %1750 = vmatpush1.xpose.msra.mxu0 0.0
      %1751 = vmatprep.subr.mxu0 0.0
      %1752 = vmatpush1.xpose.msra.mxu0 0.0
      %1753 = vmatprep.subr.mxu0 0.0
      %1754 = vmatpush1.xpose.msra.mxu0 0.0
      %1755 = vmatprep.subr.mxu0 0.0
      %1756 = vmatpush1.xpose.msra.mxu0 0.0
      %1757 = vmatprep.subr.mxu0 0.0
      %1758 = vmatpush1.xpose.msra.mxu0 0.0
      %1759 = vmatprep.subr.mxu0 0.0
      %1760 = vmatpush1.xpose.msra.mxu0 0.0
      %1761 = vmatprep.subr.mxu0 0.0
      %1762 = vmatpush1.xpose.msra.mxu0 0.0
      %1763 = vmatprep.subr.mxu0 0.0
      %1764 = vmatpush1.xpose.msra.mxu0 0.0
      %1765 = vmatprep.subr.mxu0 0.0
      %1766 = vmatpush1.xpose.msra.mxu0 0.0
      %1767 = vmatprep.subr.mxu0 0.0
      %1768 = vmatpush1.xpose.msra.mxu0 0.0
      %1769 = vmatprep.subr.mxu0 0.0
      %1770 = vmatpush1.xpose.msra.mxu0 0.0
      %1771 = vmatprep.mubr.f32.mxu0 0.0
      %1772 = vmatmul.mubr.f32.gmra.mrb[0].mxu0 %v1701
      %v1773 = vpop.f32.mrb[0].mxu0
      %v1774 = vadd.f32 0.0, %v1773
      %v1775 = vpop.f32.mrb[0].mxu0
      %1776 = vdwg.mxu0
      %v1777 = vsel %vm1044, %v1774, -inf
      %1778 = vmax.xlane.f32.xlu0 %v1777
      %v1779 = vpop.xlane.xlu0 %1778
      %v1780 = vsub.f32 %v1774, %v1779
      %v1781 = vmul.f32 %v1780, 1.442695
      %v1782 = vpow.pop %v1781
      %v1783 = vsel %vm1044, %v1782, 0.0
      %1784 = vadd.xlane.f32.xlu0 %v1783
      %v1785 = vpop.xlane.xlu0 %1784
      %v1786 = vrcp.pop %v1785
      %v1787 = vmul.f32 %v1782, %v1786
      %1788 = vrot.lane.b32.xlu0 %v952, 104
      %v1789 = vpop.permute.xlu0 %1788
      %1790 = vrot.lane.b32.xlu0 %v957, 104
      %v1791 = vpop.permute.xlu0 %1790
      %v1795 = vsel %vm1044, %v1787, 0
      %1797 = vmatprep.subr.mxu0 0.0
      %1798 = vmatpush1.msra.mxu0 %v1789
      %1799 = vmatprep.subr.mxu0 0.0
      %1800 = vmatpush1.msra.mxu0 %v1791
      %1801 = vmatprep.subr.mxu0 0.0
      %1802 = vmatpush1.msra.mxu0 0.0
      %1803 = vmatprep.subr.mxu0 0.0
      %1804 = vmatpush1.msra.mxu0 0.0
      %1805 = vmatprep.subr.mxu0 0.0
      %1806 = vmatpush1.msra.mxu0 0.0
      %1807 = vmatprep.subr.mxu0 0.0
      %1808 = vmatpush1.msra.mxu0 0.0
      %1809 = vmatprep.subr.mxu0 0.0
      %1810 = vmatpush1.msra.mxu0 0.0
      %1811 = vmatprep.subr.mxu0 0.0
      %1812 = vmatpush1.msra.mxu0 0.0
      %1813 = vmatprep.subr.mxu0 0.0
      %1814 = vmatpush1.msra.mxu0 0.0
      %1815 = vmatprep.subr.mxu0 0.0
      %1816 = vmatpush1.msra.mxu0 0.0
      %1817 = vmatprep.subr.mxu0 0.0
      %1818 = vmatpush1.msra.mxu0 0.0
      %1819 = vmatprep.subr.mxu0 0.0
      %1820 = vmatpush1.msra.mxu0 0.0
      %1821 = vmatprep.subr.mxu0 0.0
      %1822 = vmatpush1.msra.mxu0 0.0
      %1823 = vmatprep.subr.mxu0 0.0
      %1824 = vmatpush1.msra.mxu0 0.0
      %1825 = vmatprep.subr.mxu0 0.0
      %1826 = vmatpush1.msra.mxu0 0.0
      %1827 = vmatprep.subr.mxu0 0.0
      %1828 = vmatpush1.msra.mxu0 0.0
      %1829 = vmatprep.subr.mxu0 0.0
      %1830 = vmatpush1.msra.mxu0 0.0
      %1831 = vmatprep.subr.mxu0 0.0
      %1832 = vmatpush1.msra.mxu0 0.0
      %1833 = vmatprep.subr.mxu0 0.0
      %1834 = vmatpush1.msra.mxu0 0.0
      %1835 = vmatprep.subr.mxu0 0.0
      %1836 = vmatpush1.msra.mxu0 0.0
      %1837 = vmatprep.subr.mxu0 0.0
      %1838 = vmatpush1.msra.mxu0 0.0
      %1839 = vmatprep.subr.mxu0 0.0
      %1840 = vmatpush1.msra.mxu0 0.0
      %1841 = vmatprep.subr.mxu0 0.0
      %1842 = vmatpush1.msra.mxu0 0.0
      %1843 = vmatprep.subr.mxu0 0.0
      %1844 = vmatpush1.msra.mxu0 0.0
      %1845 = vmatprep.subr.mxu0 0.0
      %1846 = vmatpush1.msra.mxu0 0.0
      %1847 = vmatprep.subr.mxu0 0.0
      %1848 = vmatpush1.msra.mxu0 0.0
      %1849 = vmatprep.subr.mxu0 0.0
      %1850 = vmatpush1.msra.mxu0 0.0
      %1851 = vmatprep.subr.mxu0 0.0
      %1852 = vmatpush1.msra.mxu0 0.0
      %1853 = vmatprep.subr.mxu0 0.0
      %1854 = vmatpush1.msra.mxu0 0.0
      %1855 = vmatprep.subr.mxu0 0.0
      %1856 = vmatpush1.msra.mxu0 0.0
      %1857 = vmatprep.subr.mxu0 0.0
      %1858 = vmatpush1.msra.mxu0 0.0
      %1859 = vmatprep.subr.mxu0 0.0
      %1860 = vmatpush1.msra.mxu0 0.0
      %1861 = vmatprep.mubr.f32.mxu0 0.0
      %1862 = vmatmul.mubr.f32.gmra.mrb[0].mxu0 %v1795
      %v1863 = vpop.f32.mrb[0].mxu0
      %v1864 = vadd.f32 0.0, %v1863
      %v1865 = vpop.f32.mrb[0].mxu0
      %1866 = vdwg.mxu0
      %v1868 = vsel %vm964, %v1864, 0
      %1870 = vmatprep.subr.mxu0 0.0
      %1871 = vmatpush1.msra.mxu0 %v963
      %1872 = vmatprep.subr.mxu0 0.0
      %1873 = vmatpush1.msra.mxu0 0.0
      %1874 = vmatprep.subr.mxu0 0.0
      %1875 = vmatpush1.msra.mxu0 0.0
      %1876 = vmatprep.subr.mxu0 0.0
      %1877 = vmatpush1.msra.mxu0 0.0
      %1878 = vmatprep.subr.mxu0 0.0
      %1879 = vmatpush1.msra.mxu0 0.0
      %1880 = vmatprep.subr.mxu0 0.0
      %1881 = vmatpush1.msra.mxu0 0.0
      %1882 = vmatprep.subr.mxu0 0.0
      %1883 = vmatpush1.msra.mxu0 0.0
      %1884 = vmatprep.subr.mxu0 0.0
      %1885 = vmatpush1.msra.mxu0 0.0
      %1886 = vmatprep.subr.mxu0 0.0
      %1887 = vmatpush1.msra.mxu0 0.0
      %1888 = vmatprep.subr.mxu0 0.0
      %1889 = vmatpush1.msra.mxu0 0.0
      %1890 = vmatprep.subr.mxu0 0.0
      %1891 = vmatpush1.msra.mxu0 0.0
      %1892 = vmatprep.subr.mxu0 0.0
      %1893 = vmatpush1.msra.mxu0 0.0
      %1894 = vmatprep.subr.mxu0 0.0
      %1895 = vmatpush1.msra.mxu0 0.0
      %1896 = vmatprep.subr.mxu0 0.0
      %1897 = vmatpush1.msra.mxu0 0.0
      %1898 = vmatprep.subr.mxu0 0.0
      %1899 = vmatpush1.msra.mxu0 0.0
      %1900 = vmatprep.subr.mxu0 0.0
      %1901 = vmatpush1.msra.mxu0 0.0
      %1902 = vmatprep.subr.mxu0 0.0
      %1903 = vmatpush1.msra.mxu0 0.0
      %1904 = vmatprep.subr.mxu0 0.0
      %1905 = vmatpush1.msra.mxu0 0.0
      %1906 = vmatprep.subr.mxu0 0.0
      %1907 = vmatpush1.msra.mxu0 0.0
      %1908 = vmatprep.subr.mxu0 0.0
      %1909 = vmatpush1.msra.mxu0 0.0
      %1910 = vmatprep.subr.mxu0 0.0
      %1911 = vmatpush1.msra.mxu0 0.0
      %1912 = vmatprep.subr.mxu0 0.0
      %1913 = vmatpush1.msra.mxu0 0.0
      %1914 = vmatprep.subr.mxu0 0.0
      %1915 = vmatpush1.msra.mxu0 0.0
      %1916 = vmatprep.subr.mxu0 0.0
      %1917 = vmatpush1.msra.mxu0 0.0
      %1918 = vmatprep.subr.mxu0 0.0
      %1919 = vmatpush1.msra.mxu0 0.0
      %1920 = vmatprep.subr.mxu0 0.0
      %1921 = vmatpush1.msra.mxu0 0.0
      %1922 = vmatprep.subr.mxu0 0.0
      %1923 = vmatpush1.msra.mxu0 0.0
      %1924 = vmatprep.subr.mxu0 0.0
      %1925 = vmatpush1.msra.mxu0 0.0
      %1926 = vmatprep.subr.mxu0 0.0
      %1927 = vmatpush1.msra.mxu0 0.0
      %1928 = vmatprep.subr.mxu0 0.0
      %1929 = vmatpush1.msra.mxu0 0.0
      %1930 = vmatprep.subr.mxu0 0.0
      %1931 = vmatpush1.msra.mxu0 0.0
      %1932 = vmatprep.subr.mxu0 0.0
      %1933 = vmatpush1.msra.mxu0 0.0
      %1934 = vmatprep.mubr.f32.mxu0 0.0
      %1935 = vmatmul.mubr.f32.gmra.mrb[0].mxu0 %v1868
      %v1936 = vpop.f32.mrb[0].mxu0
      %v1937 = vadd.f32 0.0, %v1936
      %v1938 = vpop.f32.mrb[0].mxu0
      %1939 = vdwg.mxu0
      %v1940 = vadd.f32 %v1694, %v1937
      %v1941 = vld [vmem:[%s11] sm:$0x1]
      %v1943 = vlaneseq
      %v1944 = vshrl.u32 %v1943, 7
      %v1945 = vsub.s32 0, %v1944
      %v1946 = vrot.slane %v1941, %v1945
      %v1948 = vadd.f32 %v1940, %v1946
      %v1949 = vld [vmem:[%s16] sm:$0x1]
      %v1950 = vld [vmem:[%s17] sm:$0x1]
      %v1951 = vadd.f32 %v682, %v1948
      %v1952 = vsel %vm698, %v1951, 0.0
      %1953 = vadd.xlane.f32.xlu0 %v1952
      %v1954 = vpop.xlane.xlu0 %1953
      %v1955 = vrcp.pop 32.0
      %v1956 = vmul.f32 %v1954, %v1955
      %v1957 = vsub.f32 %v1951, %v1956
      %v1958 = vmul.f32 %v1957, %v1957
      %v1959 = vsel %vm698, %v1958, 0.0
      %1960 = vadd.xlane.f32.xlu0 %v1959
      %v1961 = vpop.xlane.xlu0 %1960
      %v1962 = vmul.f32 %v1961, %v1955
      %v1963 = vadd.f32 %v1962, 1e-05
      %v1964 = vrsqrt.pop %v1963
      %v1965 = vmul.f32 %v1957, %v1964
      %v1967 = vlaneseq
      %v1968 = vshrl.u32 %v1967, 7
      %v1969 = vsub.s32 0, %v1968
      %v1970 = vrot.slane %v1949, %v1969
      %v1972 = vmul.f32 %v1965, %v1970
      %v1974 = vlaneseq
      %v1975 = vshrl.u32 %v1974, 7
      %v1976 = vsub.s32 0, %v1975
      %v1977 = vrot.slane %v1950, %v1976
      %v1979 = vadd.f32 %v1972, %v1977
      %v1980 = vld [vmem:[%s12] sm:$0xff]
      %v1981 = vld [vmem:[%s12 + $0x8] sm:$0xff]
      %v1982 = vld [vmem:[%s12 + $0x10] sm:$0xff]
      %v1983 = vld [vmem:[%s12 + $0x18] sm:$0xff]
      %v1984 = vld [vmem:[%s13] sm:$0x1]
      %v1986 = vlaneseq
      %v1987 = vshrl.u32 %v1986, 7
      %v1988 = vsub.s32 0, %v1987
      %v1989 = vrot.slane %v1984, %v1988
      %v1992 = vsel %vm698, %v1979, 0
      %1994 = vmatprep.subr.mxu0 0.0
      %1995 = vmatpush1.msra.mxu0 %v1980
      %1996 = vmatprep.subr.mxu0 0.0
      %1997 = vmatpush1.msra.mxu0 %v1981
      %1998 = vmatprep.subr.mxu0 0.0
      %1999 = vmatpush1.msra.mxu0 %v1982
      %2000 = vmatprep.subr.mxu0 0.0
      %2001 = vmatpush1.msra.mxu0 %v1983
      %2002 = vmatprep.subr.mxu0 0.0
      %2003 = vmatpush1.msra.mxu0 0.0
      %2004 = vmatprep.subr.mxu0 0.0
      %2005 = vmatpush1.msra.mxu0 0.0
      %2006 = vmatprep.subr.mxu0 0.0
      %2007 = vmatpush1.msra.mxu0 0.0
      %2008 = vmatprep.subr.mxu0 0.0
      %2009 = vmatpush1.msra.mxu0 0.0
      %2010 = vmatprep.subr.mxu0 0.0
      %2011 = vmatpush1.msra.mxu0 0.0
      %2012 = vmatprep.subr.mxu0 0.0
      %2013 = vmatpush1.msra.mxu0 0.0
      %2014 = vmatprep.subr.mxu0 0.0
      %2015 = vmatpush1.msra.mxu0 0.0
      %2016 = vmatprep.subr.mxu0 0.0
      %2017 = vmatpush1.msra.mxu0 0.0
      %2018 = vmatprep.subr.mxu0 0.0
      %2019 = vmatpush1.msra.mxu0 0.0
      %2020 = vmatprep.subr.mxu0 0.0
      %2021 = vmatpush1.msra.mxu0 0.0
      %2022 = vmatprep.subr.mxu0 0.0
      %2023 = vmatpush1.msra.mxu0 0.0
      %2024 = vmatprep.subr.mxu0 0.0
      %2025 = vmatpush1.msra.mxu0 0.0
      %2026 = vmatprep.subr.mxu0 0.0
      %2027 = vmatpush1.msra.mxu0 0.0
      %2028 = vmatprep.subr.mxu0 0.0
      %2029 = vmatpush1.msra.mxu0 0.0
      %2030 = vmatprep.subr.mxu0 0.0
      %2031 = vmatpush1.msra.mxu0 0.0
      %2032 = vmatprep.subr.mxu0 0.0
      %2033 = vmatpush1.msra.mxu0 0.0
      %2034 = vmatprep.subr.mxu0 0.0
      %2035 = vmatpush1.msra.mxu0 0.0
      %2036 = vmatprep.subr.mxu0 0.0
      %2037 = vmatpush1.msra.mxu0 0.0
      %2038 = vmatprep.subr.mxu0 0.0
      %2039 = vmatpush1.msra.mxu0 0.0
      %2040 = vmatprep.subr.mxu0 0.0
      %2041 = vmatpush1.msra.mxu0 0.0
      %2042 = vmatprep.subr.mxu0 0.0
      %2043 = vmatpush1.msra.mxu0 0.0
      %2044 = vmatprep.subr.mxu0 0.0
      %2045 = vmatpush1.msra.mxu0 0.0
      %2046 = vmatprep.subr.mxu0 0.0
      %2047 = vmatpush1.msra.mxu0 0.0
      %2048 = vmatprep.subr.mxu0 0.0
      %2049 = vmatpush1.msra.mxu0 0.0
      %2050 = vmatprep.subr.mxu0 0.0
      %2051 = vmatpush1.msra.mxu0 0.0
      %2052 = vmatprep.subr.mxu0 0.0
      %2053 = vmatpush1.msra.mxu0 0.0
      %2054 = vmatprep.subr.mxu0 0.0
      %2055 = vmatpush1.msra.mxu0 0.0
      %2056 = vmatprep.subr.mxu0 0.0
      %2057 = vmatpush1.msra.mxu0 0.0
      %2058 = vmatprep.mubr.f32.mxu0 0.0
      %2059 = vmatmul.mubr.f32.gmra.mrb[0].mxu0 %v1992
      %v2060 = vpop.f32.mrb[0].mxu0
      %v2061 = vadd.f32 %v1989, %v2060
      %v2062 = vpop.f32.mrb[0].mxu0
      %2063 = vdwg.mxu0
      %v2064 = vmax.f32 %v2061, 0.0
      %v2065 = vld [vmem:[%s14] sm:$0xff]
      %v2066 = vld [vmem:[%s14 + $0x8] sm:$0xff]
      %v2067 = vld [vmem:[%s14 + $0x10] sm:$0xff]
      %v2068 = vld [vmem:[%s14 + $0x18] sm:$0xff]
      %v2069 = vld [vmem:[%s14 + $0x20] sm:$0xff]
      %v2070 = vld [vmem:[%s14 + $0x28] sm:$0xff]
      %v2071 = vld [vmem:[%s14 + $0x30] sm:$0xff]
      %v2072 = vld [vmem:[%s14 + $0x38] sm:$0xff]
      %v2073 = vld [vmem:[%s15] sm:$0x1]
      %v2075 = vlaneseq
      %v2076 = vshrl.u32 %v2075, 7
      %v2077 = vsub.s32 0, %v2076
      %v2078 = vrot.slane %v2073, %v2077
      %vm2080 = vcmask 523264
      %v2082 = vsel %vm2080, %v2064, 0
      %2084 = vmatprep.subr.mxu0 0.0
      %2085 = vmatpush1.msra.mxu0 %v2065
      %2086 = vmatprep.subr.mxu0 0.0
      %2087 = vmatpush1.msra.mxu0 %v2066
      %2088 = vmatprep.subr.mxu0 0.0
      %2089 = vmatpush1.msra.mxu0 %v2067
      %2090 = vmatprep.subr.mxu0 0.0
      %2091 = vmatpush1.msra.mxu0 %v2068
      %2092 = vmatprep.subr.mxu0 0.0
      %2093 = vmatpush1.msra.mxu0 %v2069
      %2094 = vmatprep.subr.mxu0 0.0
      %2095 = vmatpush1.msra.mxu0 %v2070
      %2096 = vmatprep.subr.mxu0 0.0
      %2097 = vmatpush1.msra.mxu0 %v2071
      %2098 = vmatprep.subr.mxu0 0.0
      %2099 = vmatpush1.msra.mxu0 %v2072
      %2100 = vmatprep.subr.mxu0 0.0
      %2101 = vmatpush1.msra.mxu0 0.0
      %2102 = vmatprep.subr.mxu0 0.0
      %2103 = vmatpush1.msra.mxu0 0.0
      %2104 = vmatprep.subr.mxu0 0.0
      %2105 = vmatpush1.msra.mxu0 0.0
      %2106 = vmatprep.subr.mxu0 0.0
      %2107 = vmatpush1.msra.mxu0 0.0
      %2108 = vmatprep.subr.mxu0 0.0
      %2109 = vmatpush1.msra.mxu0 0.0
      %2110 = vmatprep.subr.mxu0 0.0
      %2111 = vmatpush1.msra.mxu0 0.0
      %2112 = vmatprep.subr.mxu0 0.0
      %2113 = vmatpush1.msra.mxu0 0.0
      %2114 = vmatprep.subr.mxu0 0.0
      %2115 = vmatpush1.msra.mxu0 0.0
      %2116 = vmatprep.subr.mxu0 0.0
      %2117 = vmatpush1.msra.mxu0 0.0
      %2118 = vmatprep.subr.mxu0 0.0
      %2119 = vmatpush1.msra.mxu0 0.0
      %2120 = vmatprep.subr.mxu0 0.0
      %2121 = vmatpush1.msra.mxu0 0.0
      %2122 = vmatprep.subr.mxu0 0.0
      %2123 = vmatpush1.msra.mxu0 0.0
      %2124 = vmatprep.subr.mxu0 0.0
      %2125 = vmatpush1.msra.mxu0 0.0
      %2126 = vmatprep.subr.mxu0 0.0
      %2127 = vmatpush1.msra.mxu0 0.0
      %2128 = vmatprep.subr.mxu0 0.0
      %2129 = vmatpush1.msra.mxu0 0.0
      %2130 = vmatprep.subr.mxu0 0.0
      %2131 = vmatpush1.msra.mxu0 0.0
      %2132 = vmatprep.subr.mxu0 0.0
      %2133 = vmatpush1.msra.mxu0 0.0
      %2134 = vmatprep.subr.mxu0 0.0
      %2135 = vmatpush1.msra.mxu0 0.0
      %2136 = vmatprep.subr.mxu0 0.0
      %2137 = vmatpush1.msra.mxu0 0.0
      %2138 = vmatprep.subr.mxu0 0.0
      %2139 = vmatpush1.msra.mxu0 0.0
      %2140 = vmatprep.subr.mxu0 0.0
      %2141 = vmatpush1.msra.mxu0 0.0
      %2142 = vmatprep.subr.mxu0 0.0
      %2143 = vmatpush1.msra.mxu0 0.0
      %2144 = vmatprep.subr.mxu0 0.0
      %2145 = vmatpush1.msra.mxu0 0.0
      %2146 = vmatprep.subr.mxu0 0.0
      %2147 = vmatpush1.msra.mxu0 0.0
      %2148 = vmatprep.mubr.f32.mxu0 0.0
      %2149 = vmatmul.mubr.f32.gmra.mrb[0].mxu0 %v2082
      %v2150 = vpop.f32.mrb[0].mxu0
      %v2151 = vadd.f32 %v2078, %v2150
      %v2152 = vpop.f32.mrb[0].mxu0
      %2153 = vdwg.mxu0
      %v2154 = vld [vmem:[%s18] sm:$0x1]
      %v2155 = vld [vmem:[%s19] sm:$0x1]
      %v2156 = vadd.f32 %v1979, %v2151
      %v2157 = vsel %vm698, %v2156, 0.0
      %2158 = vadd.xlane.f32.xlu0 %v2157
      %v2159 = vpop.xlane.xlu0 %2158
      %v2160 = vmul.f32 %v2159, %v1955
      %v2161 = vsub.f32 %v2156, %v2160
      %v2162 = vmul.f32 %v2161, %v2161
      %v2163 = vsel %vm698, %v2162, 0.0
      %2164 = vadd.xlane.f32.xlu0 %v2163
      %v2165 = vpop.xlane.xlu0 %2164
      %v2166 = vmul.f32 %v2165, %v1955
      %v2167 = vadd.f32 %v2166, 1e-05
      %v2168 = vrsqrt.pop %v2167
      %v2169 = vmul.f32 %v2161, %v2168
      %v2171 = vlaneseq
      %v2172 = vshrl.u32 %v2171, 7
      %v2173 = vsub.s32 0, %v2172
      %v2174 = vrot.slane %v2154, %v2173
      %v2176 = vmul.f32 %v2169, %v2174
      %v2178 = vlaneseq
      %v2179 = vshrl.u32 %v2178, 7
      %v2180 = vsub.s32 0, %v2179
      %v2181 = vrot.slane %v2155, %v2180
      %v2183 = vadd.f32 %v2176, %v2181
      %2184 = vst.msk [vmem:[%s681] sm:$0xff] %vm698, %v2183
      %p2185 = scmp.lt.s32.totalorder %s31, 1
      %s2186 = scalar_select %p2185, %s31, 1
      %s2187 = smul.addr %s2186, 8
      %s2188 = scalar_lea.vmem %s20, %s2187
      // Predicated region
      $region101: #{decoder_forward.1} parent=99 // pred_check
        %p2189 = pneg %p489
      $region102: #{decoder_forward.1} parent=99 // pred_check_branch
        %2191 = sbr.rel (%p2189) target = $region104
      $region103: #{decoder_forward.1} parent=99 // pred_region
        _
      $region104: #{decoder_forward.1} parent=99 // pred_fallthru
        _
    $region100: #{decoder_forward.1} parent=5 // pred_fallthru
      _
    %p2192 = scmp.le.s32.totalorder 2, %s26
    // Predicated region
    $region105: #{decoder_forward.1} parent=5 // pred_check
      %p2193 = pneg %p2192
    $region106: #{decoder_forward.1} parent=5 // pred_check_branch
      %2195 = sbr.rel (%p2193) target = $region108
    $region107: #{decoder_forward.1} parent=5 // pred_region
      %s2196 = ssub.s32 %s26, 2
      // Predicated region
      $region109: #{decoder_forward.1} parent=107 // pred_check
        %p2197 = pneg %p495
      $region110: #{decoder_forward.1} parent=107 // pred_check_branch
        %2199 = sbr.rel (%p2197) target = $region112
      $region111: #{decoder_forward.1} parent=107 // pred_region
        %p2200 = scmp.lt.s32.totalorder %s32, 1
        %s2201 = scalar_select %p2200, %s32, 1
        %s2202 = smul.addr %s2201, 8
        %s2203 = scalar_lea.vmem %s20, %s2202
      $region112: #{decoder_forward.1} parent=107 // pred_fallthru
        _
    $region108: #{decoder_forward.1} parent=5 // pred_fallthru
      _
  $region6: #{decoder_forward.1} parent=0 // loop_footer
    %s30 = sadd.s32 1, %s26
  $region7: #{decoder_forward.1} parent=0 // loop_footer_branch
    %25 = sbr.rel target = $region3
  $region8: #{decoder_forward.1} parent=0 // loop_exit
    _

</llo_original>
